<compile_context>
chip_gen: v5e
topology: v5e:2x2
jax: 0.10.0
libtpu: 0.0.40
codegen_flags: <defaults>
</compile_context>

<pallas_src>
import jax
import jax.numpy as jnp
from jax.experimental import pallas as pl
from jax.experimental.pallas import tpu as pltpu

HIDDEN_DIM = 4     # hidden_dim in the module
LAYER_DIM = 2      # layer_dim
OUTPUT_DIM = 2     # output_dim
INPUT_DIM = 16     # features_num (input_dim)
SEQ_LEN = 8
BATCH = 2

# TODO(synk): the module also builds an nn.GRU, but forward() never calls it, so it is
# intentionally not implemented here.


# ---------------------------------------------------------------------------
# Pallas kernel: whole LSTM stack + classifier in one grid-less invocation.
# x arrives pre-flattened as (seq*batch, input_dim). Gate column order in the
# fused weights/biases is [i, f, o, g] (reordered at prepare time) so a single
# sigmoid covers i/f/o and a single tanh covers g.
# ---------------------------------------------------------------------------
def rnn_model_kernel(x_ref, wih0_ref, whh0_ref, b0_ref,
                     wih1_ref, whh1_ref, b1_ref,
                     wc_ref, bc_ref, out_ref,
                     h0_scr, hsel_scr):
    seq = hsel_scr.shape[0]
    H = whh0_ref.shape[0]
    batch = x_ref.shape[0] // seq

    # Hoist all parameter loads out of the recurrent loops.
    wih0 = wih0_ref[...]
    whh0 = whh0_ref[...]
    b0 = b0_ref[...]
    wih1 = wih1_ref[...]
    whh1 = whh1_ref[...]
    b1 = b1_ref[...]

    def cell_step(pre_x, h, c, whh):
        # pre_x: (batch, 4H) hoisted input-side pre-activation (x @ Wih + b).
        # Only the recurrent dot + activations sit on the serial critical path.
        pre = pre_x + jnp.dot(h, whh, preferred_element_type=jnp.float32)
        sig = jax.nn.sigmoid(pre[:, :3 * H])      # fused [i, f, o]
        g = jnp.tanh(pre[:, 3 * H:])
        i_g = sig[:, :H]
        f_g = sig[:, H:2 * H]
        o_g = sig[:, 2 * H:3 * H]
        c_new = f_g * c + i_g * g
        h_new = o_g * jnp.tanh(c_new)
        return h_new, c_new

    z = jnp.zeros((batch, H), jnp.float32)

    # ---- Layer 0: one hoisted (seq*batch, in) @ (in, 4H) dot, then the time loop ----
    xg0 = jnp.dot(x_ref[...], wih0, preferred_element_type=jnp.float32) + b0
    h, c = z, z
    for t in range(seq):                          # static unroll (seq small & static)
        h, c = cell_step(xg0[t * batch:(t + 1) * batch, :], h, c, whh0)
        h0_scr[t * batch:(t + 1) * batch, :] = h  # store into resident VMEM scratch

    # ---- Layer 1: hoisted input-side dot over layer-0 outputs, then the time loop ----
    xg1 = jnp.dot(h0_scr[...], wih1, preferred_element_type=jnp.float32) + b1
    h, c = z, z
    for t in range(seq):
        h, c = cell_step(xg1[t * batch:(t + 1) * batch, :], h, c, whh1)
        # out[:, -1, :] in the PyTorch forward == last batch element, per timestep
        hsel_scr[t:t + 1, :] = h[batch - 1:batch, :]

    # ---- Classifier ----
    out_ref[...] = (jnp.dot(hsel_scr[...], wc_ref[...],
                            preferred_element_type=jnp.float32)
                    + bc_ref[...])


# ---------------------------------------------------------------------------
# Parameters: PyTorch-style shapes/init, plus a one-time prepare step that fuses
# and reorders gates so the jitted forward does no per-call repacking.
# ---------------------------------------------------------------------------
def make_params(key):
    # PyTorch LSTM & Linear default init: U(-k, k), k = 1/sqrt(hidden_dim)
    k = 1.0 / (HIDDEN_DIM ** 0.5)

    def u(kk, shape):
        return jax.random.uniform(kk, shape, jnp.float32, -k, k)

    keys = jax.random.split(key, 10)
    return dict(
        w_ih_l0=u(keys[0], (4 * HIDDEN_DIM, INPUT_DIM)),
        w_hh_l0=u(keys[1], (4 * HIDDEN_DIM, HIDDEN_DIM)),
        b_ih_l0=u(keys[2], (4 * HIDDEN_DIM,)),
        b_hh_l0=u(keys[3], (4 * HIDDEN_DIM,)),
        w_ih_l1=u(keys[4], (4 * HIDDEN_DIM, HIDDEN_DIM)),
        w_hh_l1=u(keys[5], (4 * HIDDEN_DIM, HIDDEN_DIM)),
        b_ih_l1=u(keys[6], (4 * HIDDEN_DIM,)),
        b_hh_l1=u(keys[7], (4 * HIDDEN_DIM,)),
        w_cls=u(keys[8], (OUTPUT_DIM, HIDDEN_DIM)),
        b_cls=u(keys[9], (OUTPUT_DIM,)),
    )


def _fuse_weight(w):
    # PyTorch (4H, in) rows in gate order [i, f, g, o] ->
    # fused transposed (in, 4H) with column order [i, f, o, g].
    H = HIDDEN_DIM
    wi, wf, wg, wo = w[:H], w[H:2 * H], w[2 * H:3 * H], w[3 * H:]
    return jnp.concatenate([wi, wf, wo, wg], axis=0).T


def _fuse_bias(b_ih, b_hh):
    # combined bias (4H,) [i,f,g,o] -> (1, 4H) in order [i, f, o, g]
    H = HIDDEN_DIM
    b = b_ih + b_hh
    return jnp.concatenate([b[:H], b[H:2 * H], b[3 * H:], b[2 * H:3 * H]]).reshape(1, 4 * H)


def prepare_params(params):
    """One-time repacking (call once, outside the per-step jitted forward)."""
    return dict(
        wih0=_fuse_weight(params["w_ih_l0"]),
        whh0=_fuse_weight(params["w_hh_l0"]),
        b0=_fuse_bias(params["b_ih_l0"], params["b_hh_l0"]),
        wih1=_fuse_weight(params["w_ih_l1"]),
        whh1=_fuse_weight(params["w_hh_l1"]),
        b1=_fuse_bias(params["b_ih_l1"], params["b_hh_l1"]),
        wc=params["w_cls"].T,                        # (H, out)
        bc=params["b_cls"].reshape(1, OUTPUT_DIM),   # (1, out)
    )


@jax.jit
def rnn_model_forward(x, prepped):
    seq, batch, _ = x.shape
    x2d = x.reshape(seq * batch, INPUT_DIM)          # contiguous, free reshape
    return pl.pallas_call(
        rnn_model_kernel,
        out_shape=jax.ShapeDtypeStruct((seq, OUTPUT_DIM), jnp.float32),
        in_specs=[pl.BlockSpec(memory_space=pltpu.MemorySpace.VMEM)] * 9,
        out_specs=pl.BlockSpec(memory_space=pltpu.MemorySpace.VMEM),
        scratch_shapes=[
            pltpu.VMEM((seq * batch, HIDDEN_DIM), jnp.float32),  # layer-0 hidden seq
            pltpu.VMEM((seq, HIDDEN_DIM), jnp.float32),          # selected layer-1 rows
        ],
    )(x2d, prepped["wih0"], prepped["whh0"], prepped["b0"],
      prepped["wih1"], prepped["whh1"], prepped["b1"],
      prepped["wc"], prepped["bc"])


# ---------------------------------------------------------------------------
# Pure-JAX reference mirroring torch.nn.LSTM semantics (for validation).
# ---------------------------------------------------------------------------
def reference_forward(x, params):
    H = HIDDEN_DIM

    def lstm_layer(inp, w_ih, w_hh, b_ih, b_hh):
        seq, batch, _ = inp.shape
        h = jnp.zeros((batch, H), jnp.float32)
        c = jnp.zeros((batch, H), jnp.float32)
        outs = []
        for t in range(seq):
            g = inp[t] @ w_ih.T + b_ih + h @ w_hh.T + b_hh
            i = jax.nn.sigmoid(g[:, :H])
            f = jax.nn.sigmoid(g[:, H:2 * H])
            gg = jnp.tanh(g[:, 2 * H:3 * H])
            o = jax.nn.sigmoid(g[:, 3 * H:])
            c = f * c + i * gg
            h = o * jnp.tanh(c)
            outs.append(h)
        return jnp.stack(outs, axis=0)

    h0 = lstm_layer(x, params["w_ih_l0"], params["w_hh_l0"],
                    params["b_ih_l0"], params["b_hh_l0"])
    h1 = lstm_layer(h0, params["w_ih_l1"], params["w_hh_l1"],
                    params["b_ih_l1"], params["b_hh_l1"])
    last = h1[:, -1, :]                        # == out[:, -1, :] in PyTorch forward
    return last @ params["w_cls"].T + params["b_cls"]


if __name__ == "__main__":
    key = jax.random.PRNGKey(0)
    kx, kp = jax.random.split(key)
    x = jax.random.normal(kx, (SEQ_LEN, BATCH, INPUT_DIM), jnp.float32)
    params = make_params(kp)
    prepped = prepare_params(params)           # one-time packing, outside the hot path

    out = rnn_model_forward(x, prepped)
    out = jax.block_until_ready(out)

    ref = reference_forward(x, params)
    assert out.shape == (SEQ_LEN, OUTPUT_DIM), out.shape
    assert jnp.allclose(out, ref, rtol=1e-4, atol=1e-4), (out, ref)

    print("KERNEL_OK")
</pallas_src>

<mosaic_0001>
module attributes {stable_mosaic.version = 11 : i64} {
  func.func @rnn_model_kernel(%arg0: memref<16x16xf32, #tpu.memory_space<vmem>>, %arg1: memref<16x16xf32, #tpu.memory_space<vmem>>, %arg2: memref<4x16xf32, #tpu.memory_space<vmem>>, %arg3: memref<1x16xf32, #tpu.memory_space<vmem>>, %arg4: memref<4x16xf32, #tpu.memory_space<vmem>>, %arg5: memref<4x16xf32, #tpu.memory_space<vmem>>, %arg6: memref<1x16xf32, #tpu.memory_space<vmem>>, %arg7: memref<4x2xf32, #tpu.memory_space<vmem>>, %arg8: memref<1x2xf32, #tpu.memory_space<vmem>>, %arg9: memref<8x2xf32, #tpu.memory_space<vmem>>, %arg10: memref<16x4xf32, #tpu.memory_space<vmem>>, %arg11: memref<8x4xf32, #tpu.memory_space<vmem>>) attributes {dimension_semantics = [], scalar_prefetch = 0 : i64, scratch_operands = 2 : i64, tpu.core_type = #tpu.core_type<tc>} {
    %c0 = arith.constant 0 : index
    %c0_0 = arith.constant 0 : index
    %0 = vector.load %arg1[%c0, %c0_0] : memref<16x16xf32, #tpu.memory_space<vmem>>, vector<16x16xf32>
    %c0_1 = arith.constant 0 : index
    %c0_2 = arith.constant 0 : index
    %1 = vector.load %arg2[%c0_1, %c0_2] : memref<4x16xf32, #tpu.memory_space<vmem>>, vector<4x16xf32>
    %c0_3 = arith.constant 0 : index
    %c0_4 = arith.constant 0 : index
    %2 = vector.load %arg3[%c0_3, %c0_4] : memref<1x16xf32, #tpu.memory_space<vmem>>, vector<1x16xf32>
    %c0_5 = arith.constant 0 : index
    %c0_6 = arith.constant 0 : index
    %3 = vector.load %arg4[%c0_5, %c0_6] : memref<4x16xf32, #tpu.memory_space<vmem>>, vector<4x16xf32>
    %c0_7 = arith.constant 0 : index
    %c0_8 = arith.constant 0 : index
    %4 = vector.load %arg5[%c0_7, %c0_8] : memref<4x16xf32, #tpu.memory_space<vmem>>, vector<4x16xf32>
    %c0_9 = arith.constant 0 : index
    %c0_10 = arith.constant 0 : index
    %5 = vector.load %arg6[%c0_9, %c0_10] : memref<1x16xf32, #tpu.memory_space<vmem>>, vector<1x16xf32>
    %cst = arith.constant 0.000000e+00 : f32
    %6 = vector.broadcast %cst : f32 to vector<2x4xf32>
    %c0_11 = arith.constant 0 : index
    %c0_12 = arith.constant 0 : index
    %7 = vector.load %arg0[%c0_11, %c0_12] : memref<16x16xf32, #tpu.memory_space<vmem>>, vector<16x16xf32>
    %cst_13 = arith.constant dense<0.000000e+00> : vector<16x16xf32>
    %8 = tpu.matmul %7, %0, %cst_13 {dimension_numbers = #tpu.dot_dimension_numbers<[1], [0], [0], [1], [0, 0, 1, 1], [], []>} : vector<16x16xf32>, vector<16x16xf32>, vector<16x16xf32> -> vector<16x16xf32>
    %9 = vector.broadcast %2 : vector<1x16xf32> to vector<16x16xf32>
    %10 = arith.addf %8, %9 : vector<16x16xf32>
    %11 = vector.extract_strided_slice %10 {offsets = [0, 0], sizes = [2, 16], strides = [1, 1]} : vector<16x16xf32> to vector<2x16xf32>
    %cst_14 = arith.constant dense<0.000000e+00> : vector<2x16xf32>
    %12 = tpu.matmul %6, %1, %cst_14 {dimension_numbers = #tpu.dot_dimension_numbers<[1], [0], [0], [1], [0, 0, 1, 1], [], []>} : vector<2x4xf32>, vector<4x16xf32>, vector<2x16xf32> -> vector<2x16xf32>
    %13 = arith.addf %11, %12 : vector<2x16xf32>
    %14 = vector.extract_strided_slice %13 {offsets = [0, 0], sizes = [2, 12], strides = [1, 1]} : vector<2x16xf32> to vector<2x12xf32>
    %15 = arith.negf %14 : vector<2x12xf32>
    %16 = math.exp %15 : vector<2x12xf32>
    %cst_15 = arith.constant 1.000000e+00 : f32
    %17 = vector.broadcast %cst_15 : f32 to vector<2x12xf32>
    %18 = arith.addf %17, %16 : vector<2x12xf32>
    %19 = arith.divf %17, %18 : vector<2x12xf32>
    %20 = vector.extract_strided_slice %13 {offsets = [0, 12], sizes = [2, 4], strides = [1, 1]} : vector<2x16xf32> to vector<2x4xf32>
    %21 = math.tanh %20 : vector<2x4xf32>
    %22 = vector.extract_strided_slice %19 {offsets = [0, 0], sizes = [2, 4], strides = [1, 1]} : vector<2x12xf32> to vector<2x4xf32>
    %23 = vector.extract_strided_slice %19 {offsets = [0, 4], sizes = [2, 4], strides = [1, 1]} : vector<2x12xf32> to vector<2x4xf32>
    %24 = vector.extract_strided_slice %19 {offsets = [0, 8], sizes = [2, 4], strides = [1, 1]} : vector<2x12xf32> to vector<2x4xf32>
    %25 = arith.mulf %23, %6 : vector<2x4xf32>
    %26 = arith.mulf %22, %21 : vector<2x4xf32>
    %27 = arith.addf %25, %26 : vector<2x4xf32>
    %28 = math.tanh %27 : vector<2x4xf32>
    %29 = arith.mulf %24, %28 : vector<2x4xf32>
    %c0_16 = arith.constant 0 : index
    %c0_17 = arith.constant 0 : index
    %30 = vector.load %arg10[%c0_16, %c0_17] : memref<16x4xf32, #tpu.memory_space<vmem>>, vector<2x4xf32>
    tpu.vector_store %arg10[%c0_16, %c0_17], %29 {strides = array<i32>} : memref<16x4xf32, #tpu.memory_space<vmem>>, vector<2x4xf32>,
    %31 = vector.extract_strided_slice %10 {offsets = [2, 0], sizes = [2, 16], strides = [1, 1]} : vector<16x16xf32> to vector<2x16xf32>
    %cst_18 = arith.constant dense<0.000000e+00> : vector<2x16xf32>
    %32 = tpu.matmul %29, %1, %cst_18 {dimension_numbers = #tpu.dot_dimension_numbers<[1], [0], [0], [1], [0, 0, 1, 1], [], []>} : vector<2x4xf32>, vector<4x16xf32>, vector<2x16xf32> -> vector<2x16xf32>
    %33 = arith.addf %31, %32 : vector<2x16xf32>
    %34 = vector.extract_strided_slice %33 {offsets = [0, 0], sizes = [2, 12], strides = [1, 1]} : vector<2x16xf32> to vector<2x12xf32>
    %35 = arith.negf %34 : vector<2x12xf32>
    %36 = math.exp %35 : vector<2x12xf32>
    %cst_19 = arith.constant 1.000000e+00 : f32
    %37 = vector.broadcast %cst_19 : f32 to vector<2x12xf32>
    %38 = arith.addf %37, %36 : vector<2x12xf32>
    %39 = arith.divf %37, %38 : vector<2x12xf32>
    %40 = vector.extract_strided_slice %33 {offsets = [0, 12], sizes = [2, 4], strides = [1, 1]} : vector<2x16xf32> to vector<2x4xf32>
    %41 = math.tanh %40 : vector<2x4xf32>
    %42 = vector.extract_strided_slice %39 {offsets = [0, 0], sizes = [2, 4], strides = [1, 1]} : vector<2x12xf32> to vector<2x4xf32>
    %43 = vector.extract_strided_slice %39 {offsets = [0, 4], sizes = [2, 4], strides = [1, 1]} : vector<2x12xf32> to vector<2x4xf32>
    %44 = vector.extract_strided_slice %39 {offsets = [0, 8], sizes = [2, 4], strides = [1, 1]} : vector<2x12xf32> to vector<2x4xf32>
    %45 = arith.mulf %43, %27 : vector<2x4xf32>
    %46 = arith.mulf %42, %41 : vector<2x4xf32>
    %47 = arith.addf %45, %46 : vector<2x4xf32>
    %48 = math.tanh %47 : vector<2x4xf32>
    %49 = arith.mulf %44, %48 : vector<2x4xf32>
    %c2 = arith.constant 2 : index
    %c0_20 = arith.constant 0 : index
    %50 = vector.load %arg10[%c2, %c0_20] : memref<16x4xf32, #tpu.memory_space<vmem>>, vector<2x4xf32>
    tpu.vector_store %arg10[%c2, %c0_20], %49 {strides = array<i32>} : memref<16x4xf32, #tpu.memory_space<vmem>>, vector<2x4xf32>,
    %51 = vector.extract_strided_slice %10 {offsets = [4, 0], sizes = [2, 16], strides = [1, 1]} : vector<16x16xf32> to vector<2x16xf32>
    %cst_21 = arith.constant dense<0.000000e+00> : vector<2x16xf32>
    %52 = tpu.matmul %49, %1, %cst_21 {dimension_numbers = #tpu.dot_dimension_numbers<[1], [0], [0], [1], [0, 0, 1, 1], [], []>} : vector<2x4xf32>, vector<4x16xf32>, vector<2x16xf32> -> vector<2x16xf32>
    %53 = arith.addf %51, %52 : vector<2x16xf32>
    %54 = vector.extract_strided_slice %53 {offsets = [0, 0], sizes = [2, 12], strides = [1, 1]} : vector<2x16xf32> to vector<2x12xf32>
    %55 = arith.negf %54 : vector<2x12xf32>
    %56 = math.exp %55 : vector<2x12xf32>
    %cst_22 = arith.constant 1.000000e+00 : f32
    %57 = vector.broadcast %cst_22 : f32 to vector<2x12xf32>
    %58 = arith.addf %57, %56 : vector<2x12xf32>
    %59 = arith.divf %57, %58 : vector<2x12xf32>
    %60 = vector.extract_strided_slice %53 {offsets = [0, 12], sizes = [2, 4], strides = [1, 1]} : vector<2x16xf32> to vector<2x4xf32>
    %61 = math.tanh %60 : vector<2x4xf32>
    %62 = vector.extract_strided_slice %59 {offsets = [0, 0], sizes = [2, 4], strides = [1, 1]} : vector<2x12xf32> to vector<2x4xf32>
    %63 = vector.extract_strided_slice %59 {offsets = [0, 4], sizes = [2, 4], strides = [1, 1]} : vector<2x12xf32> to vector<2x4xf32>
    %64 = vector.extract_strided_slice %59 {offsets = [0, 8], sizes = [2, 4], strides = [1, 1]} : vector<2x12xf32> to vector<2x4xf32>
    %65 = arith.mulf %63, %47 : vector<2x4xf32>
    %66 = arith.mulf %62, %61 : vector<2x4xf32>
    %67 = arith.addf %65, %66 : vector<2x4xf32>
    %68 = math.tanh %67 : vector<2x4xf32>
    %69 = arith.mulf %64, %68 : vector<2x4xf32>
    %c4 = arith.constant 4 : index
    %c0_23 = arith.constant 0 : index
    %70 = vector.load %arg10[%c4, %c0_23] : memref<16x4xf32, #tpu.memory_space<vmem>>, vector<2x4xf32>
    tpu.vector_store %arg10[%c4, %c0_23], %69 {strides = array<i32>} : memref<16x4xf32, #tpu.memory_space<vmem>>, vector<2x4xf32>,
    %71 = vector.extract_strided_slice %10 {offsets = [6, 0], sizes = [2, 16], strides = [1, 1]} : vector<16x16xf32> to vector<2x16xf32>
    %cst_24 = arith.constant dense<0.000000e+00> : vector<2x16xf32>
    %72 = tpu.matmul %69, %1, %cst_24 {dimension_numbers = #tpu.dot_dimension_numbers<[1], [0], [0], [1], [0, 0, 1, 1], [], []>} : vector<2x4xf32>, vector<4x16xf32>, vector<2x16xf32> -> vector<2x16xf32>
    %73 = arith.addf %71, %72 : vector<2x16xf32>
    %74 = vector.extract_strided_slice %73 {offsets = [0, 0], sizes = [2, 12], strides = [1, 1]} : vector<2x16xf32> to vector<2x12xf32>
    %75 = arith.negf %74 : vector<2x12xf32>
    %76 = math.exp %75 : vector<2x12xf32>
    %cst_25 = arith.constant 1.000000e+00 : f32
    %77 = vector.broadcast %cst_25 : f32 to vector<2x12xf32>
    %78 = arith.addf %77, %76 : vector<2x12xf32>
    %79 = arith.divf %77, %78 : vector<2x12xf32>
    %80 = vector.extract_strided_slice %73 {offsets = [0, 12], sizes = [2, 4], strides = [1, 1]} : vector<2x16xf32> to vector<2x4xf32>
    %81 = math.tanh %80 : vector<2x4xf32>
    %82 = vector.extract_strided_slice %79 {offsets = [0, 0], sizes = [2, 4], strides = [1, 1]} : vector<2x12xf32> to vector<2x4xf32>
    %83 = vector.extract_strided_slice %79 {offsets = [0, 4], sizes = [2, 4], strides = [1, 1]} : vector<2x12xf32> to vector<2x4xf32>
    %84 = vector.extract_strided_slice %79 {offsets = [0, 8], sizes = [2, 4], strides = [1, 1]} : vector<2x12xf32> to vector<2x4xf32>
    %85 = arith.mulf %83, %67 : vector<2x4xf32>
    %86 = arith.mulf %82, %81 : vector<2x4xf32>
    %87 = arith.addf %85, %86 : vector<2x4xf32>
    %88 = math.tanh %87 : vector<2x4xf32>
    %89 = arith.mulf %84, %88 : vector<2x4xf32>
    %c6 = arith.constant 6 : index
    %c0_26 = arith.constant 0 : index
    %90 = vector.load %arg10[%c6, %c0_26] : memref<16x4xf32, #tpu.memory_space<vmem>>, vector<2x4xf32>
    tpu.vector_store %arg10[%c6, %c0_26], %89 {strides = array<i32>} : memref<16x4xf32, #tpu.memory_space<vmem>>, vector<2x4xf32>,
    %91 = vector.extract_strided_slice %10 {offsets = [8, 0], sizes = [2, 16], strides = [1, 1]} : vector<16x16xf32> to vector<2x16xf32>
    %cst_27 = arith.constant dense<0.000000e+00> : vector<2x16xf32>
    %92 = tpu.matmul %89, %1, %cst_27 {dimension_numbers = #tpu.dot_dimension_numbers<[1], [0], [0], [1], [0, 0, 1, 1], [], []>} : vector<2x4xf32>, vector<4x16xf32>, vector<2x16xf32> -> vector<2x16xf32>
    %93 = arith.addf %91, %92 : vector<2x16xf32>
    %94 = vector.extract_strided_slice %93 {offsets = [0, 0], sizes = [2, 12], strides = [1, 1]} : vector<2x16xf32> to vector<2x12xf32>
    %95 = arith.negf %94 : vector<2x12xf32>
    %96 = math.exp %95 : vector<2x12xf32>
    %cst_28 = arith.constant 1.000000e+00 : f32
    %97 = vector.broadcast %cst_28 : f32 to vector<2x12xf32>
    %98 = arith.addf %97, %96 : vector<2x12xf32>
    %99 = arith.divf %97, %98 : vector<2x12xf32>
    %100 = vector.extract_strided_slice %93 {offsets = [0, 12], sizes = [2, 4], strides = [1, 1]} : vector<2x16xf32> to vector<2x4xf32>
    %101 = math.tanh %100 : vector<2x4xf32>
    %102 = vector.extract_strided_slice %99 {offsets = [0, 0], sizes = [2, 4], strides = [1, 1]} : vector<2x12xf32> to vector<2x4xf32>
    %103 = vector.extract_strided_slice %99 {offsets = [0, 4], sizes = [2, 4], strides = [1, 1]} : vector<2x12xf32> to vector<2x4xf32>
    %104 = vector.extract_strided_slice %99 {offsets = [0, 8], sizes = [2, 4], strides = [1, 1]} : vector<2x12xf32> to vector<2x4xf32>
    %105 = arith.mulf %103, %87 : vector<2x4xf32>
    %106 = arith.mulf %102, %101 : vector<2x4xf32>
    %107 = arith.addf %105, %106 : vector<2x4xf32>
    %108 = math.tanh %107 : vector<2x4xf32>
    %109 = arith.mulf %104, %108 : vector<2x4xf32>
    %c8 = arith.constant 8 : index
    %c0_29 = arith.constant 0 : index
    %110 = vector.load %arg10[%c8, %c0_29] : memref<16x4xf32, #tpu.memory_space<vmem>>, vector<2x4xf32>
    tpu.vector_store %arg10[%c8, %c0_29], %109 {strides = array<i32>} : memref<16x4xf32, #tpu.memory_space<vmem>>, vector<2x4xf32>,
    %111 = vector.extract_strided_slice %10 {offsets = [10, 0], sizes = [2, 16], strides = [1, 1]} : vector<16x16xf32> to vector<2x16xf32>
    %cst_30 = arith.constant dense<0.000000e+00> : vector<2x16xf32>
    %112 = tpu.matmul %109, %1, %cst_30 {dimension_numbers = #tpu.dot_dimension_numbers<[1], [0], [0], [1], [0, 0, 1, 1], [], []>} : vector<2x4xf32>, vector<4x16xf32>, vector<2x16xf32> -> vector<2x16xf32>
    %113 = arith.addf %111, %112 : vector<2x16xf32>
    %114 = vector.extract_strided_slice %113 {offsets = [0, 0], sizes = [2, 12], strides = [1, 1]} : vector<2x16xf32> to vector<2x12xf32>
    %115 = arith.negf %114 : vector<2x12xf32>
    %116 = math.exp %115 : vector<2x12xf32>
    %cst_31 = arith.constant 1.000000e+00 : f32
    %117 = vector.broadcast %cst_31 : f32 to vector<2x12xf32>
    %118 = arith.addf %117, %116 : vector<2x12xf32>
    %119 = arith.divf %117, %118 : vector<2x12xf32>
    %120 = vector.extract_strided_slice %113 {offsets = [0, 12], sizes = [2, 4], strides = [1, 1]} : vector<2x16xf32> to vector<2x4xf32>
    %121 = math.tanh %120 : vector<2x4xf32>
    %122 = vector.extract_strided_slice %119 {offsets = [0, 0], sizes = [2, 4], strides = [1, 1]} : vector<2x12xf32> to vector<2x4xf32>
    %123 = vector.extract_strided_slice %119 {offsets = [0, 4], sizes = [2, 4], strides = [1, 1]} : vector<2x12xf32> to vector<2x4xf32>
    %124 = vector.extract_strided_slice %119 {offsets = [0, 8], sizes = [2, 4], strides = [1, 1]} : vector<2x12xf32> to vector<2x4xf32>
    %125 = arith.mulf %123, %107 : vector<2x4xf32>
    %126 = arith.mulf %122, %121 : vector<2x4xf32>
    %127 = arith.addf %125, %126 : vector<2x4xf32>
    %128 = math.tanh %127 : vector<2x4xf32>
    %129 = arith.mulf %124, %128 : vector<2x4xf32>
    %c10 = arith.constant 10 : index
    %c0_32 = arith.constant 0 : index
    %130 = vector.load %arg10[%c10, %c0_32] : memref<16x4xf32, #tpu.memory_space<vmem>>, vector<2x4xf32>
    tpu.vector_store %arg10[%c10, %c0_32], %129 {strides = array<i32>} : memref<16x4xf32, #tpu.memory_space<vmem>>, vector<2x4xf32>,
    %131 = vector.extract_strided_slice %10 {offsets = [12, 0], sizes = [2, 16], strides = [1, 1]} : vector<16x16xf32> to vector<2x16xf32>
    %cst_33 = arith.constant dense<0.000000e+00> : vector<2x16xf32>
    %132 = tpu.matmul %129, %1, %cst_33 {dimension_numbers = #tpu.dot_dimension_numbers<[1], [0], [0], [1], [0, 0, 1, 1], [], []>} : vector<2x4xf32>, vector<4x16xf32>, vector<2x16xf32> -> vector<2x16xf32>
    %133 = arith.addf %131, %132 : vector<2x16xf32>
    %134 = vector.extract_strided_slice %133 {offsets = [0, 0], sizes = [2, 12], strides = [1, 1]} : vector<2x16xf32> to vector<2x12xf32>
    %135 = arith.negf %134 : vector<2x12xf32>
    %136 = math.exp %135 : vector<2x12xf32>
    %cst_34 = arith.constant 1.000000e+00 : f32
    %137 = vector.broadcast %cst_34 : f32 to vector<2x12xf32>
    %138 = arith.addf %137, %136 : vector<2x12xf32>
    %139 = arith.divf %137, %138 : vector<2x12xf32>
    %140 = vector.extract_strided_slice %133 {offsets = [0, 12], sizes = [2, 4], strides = [1, 1]} : vector<2x16xf32> to vector<2x4xf32>
    %141 = math.tanh %140 : vector<2x4xf32>
    %142 = vector.extract_strided_slice %139 {offsets = [0, 0], sizes = [2, 4], strides = [1, 1]} : vector<2x12xf32> to vector<2x4xf32>
    %143 = vector.extract_strided_slice %139 {offsets = [0, 4], sizes = [2, 4], strides = [1, 1]} : vector<2x12xf32> to vector<2x4xf32>
    %144 = vector.extract_strided_slice %139 {offsets = [0, 8], sizes = [2, 4], strides = [1, 1]} : vector<2x12xf32> to vector<2x4xf32>
    %145 = arith.mulf %143, %127 : vector<2x4xf32>
    %146 = arith.mulf %142, %141 : vector<2x4xf32>
    %147 = arith.addf %145, %146 : vector<2x4xf32>
    %148 = math.tanh %147 : vector<2x4xf32>
    %149 = arith.mulf %144, %148 : vector<2x4xf32>
    %c12 = arith.constant 12 : index
    %c0_35 = arith.constant 0 : index
    %150 = vector.load %arg10[%c12, %c0_35] : memref<16x4xf32, #tpu.memory_space<vmem>>, vector<2x4xf32>
    tpu.vector_store %arg10[%c12, %c0_35], %149 {strides = array<i32>} : memref<16x4xf32, #tpu.memory_space<vmem>>, vector<2x4xf32>,
    %151 = vector.extract_strided_slice %10 {offsets = [14, 0], sizes = [2, 16], strides = [1, 1]} : vector<16x16xf32> to vector<2x16xf32>
    %cst_36 = arith.constant dense<0.000000e+00> : vector<2x16xf32>
    %152 = tpu.matmul %149, %1, %cst_36 {dimension_numbers = #tpu.dot_dimension_numbers<[1], [0], [0], [1], [0, 0, 1, 1], [], []>} : vector<2x4xf32>, vector<4x16xf32>, vector<2x16xf32> -> vector<2x16xf32>
    %153 = arith.addf %151, %152 : vector<2x16xf32>
    %154 = vector.extract_strided_slice %153 {offsets = [0, 0], sizes = [2, 12], strides = [1, 1]} : vector<2x16xf32> to vector<2x12xf32>
    %155 = arith.negf %154 : vector<2x12xf32>
    %156 = math.exp %155 : vector<2x12xf32>
    %cst_37 = arith.constant 1.000000e+00 : f32
    %157 = vector.broadcast %cst_37 : f32 to vector<2x12xf32>
    %158 = arith.addf %157, %156 : vector<2x12xf32>
    %159 = arith.divf %157, %158 : vector<2x12xf32>
    %160 = vector.extract_strided_slice %153 {offsets = [0, 12], sizes = [2, 4], strides = [1, 1]} : vector<2x16xf32> to vector<2x4xf32>
    %161 = math.tanh %160 : vector<2x4xf32>
    %162 = vector.extract_strided_slice %159 {offsets = [0, 0], sizes = [2, 4], strides = [1, 1]} : vector<2x12xf32> to vector<2x4xf32>
    %163 = vector.extract_strided_slice %159 {offsets = [0, 4], sizes = [2, 4], strides = [1, 1]} : vector<2x12xf32> to vector<2x4xf32>
    %164 = vector.extract_strided_slice %159 {offsets = [0, 8], sizes = [2, 4], strides = [1, 1]} : vector<2x12xf32> to vector<2x4xf32>
    %165 = arith.mulf %163, %147 : vector<2x4xf32>
    %166 = arith.mulf %162, %161 : vector<2x4xf32>
    %167 = arith.addf %165, %166 : vector<2x4xf32>
    %168 = math.tanh %167 : vector<2x4xf32>
    %169 = arith.mulf %164, %168 : vector<2x4xf32>
    %c14 = arith.constant 14 : index
    %c0_38 = arith.constant 0 : index
    %170 = vector.load %arg10[%c14, %c0_38] : memref<16x4xf32, #tpu.memory_space<vmem>>, vector<2x4xf32>
    tpu.vector_store %arg10[%c14, %c0_38], %169 {strides = array<i32>} : memref<16x4xf32, #tpu.memory_space<vmem>>, vector<2x4xf32>,
    %c0_39 = arith.constant 0 : index
    %c0_40 = arith.constant 0 : index
    %171 = vector.load %arg10[%c0_39, %c0_40] : memref<16x4xf32, #tpu.memory_space<vmem>>, vector<16x4xf32>
    %cst_41 = arith.constant dense<0.000000e+00> : vector<16x16xf32>
    %172 = tpu.matmul %171, %3, %cst_41 {dimension_numbers = #tpu.dot_dimension_numbers<[1], [0], [0], [1], [0, 0, 1, 1], [], []>} : vector<16x4xf32>, vector<4x16xf32>, vector<16x16xf32> -> vector<16x16xf32>
    %173 = vector.broadcast %5 : vector<1x16xf32> to vector<16x16xf32>
    %174 = arith.addf %172, %173 : vector<16x16xf32>
    %175 = vector.extract_strided_slice %174 {offsets = [0, 0], sizes = [2, 16], strides = [1, 1]} : vector<16x16xf32> to vector<2x16xf32>
    %cst_42 = arith.constant dense<0.000000e+00> : vector<2x16xf32>
    %176 = tpu.matmul %6, %4, %cst_42 {dimension_numbers = #tpu.dot_dimension_numbers<[1], [0], [0], [1], [0, 0, 1, 1], [], []>} : vector<2x4xf32>, vector<4x16xf32>, vector<2x16xf32> -> vector<2x16xf32>
    %177 = arith.addf %175, %176 : vector<2x16xf32>
    %178 = vector.extract_strided_slice %177 {offsets = [0, 0], sizes = [2, 12], strides = [1, 1]} : vector<2x16xf32> to vector<2x12xf32>
    %179 = arith.negf %178 : vector<2x12xf32>
    %180 = math.exp %179 : vector<2x12xf32>
    %cst_43 = arith.constant 1.000000e+00 : f32
    %181 = vector.broadcast %cst_43 : f32 to vector<2x12xf32>
    %182 = arith.addf %181, %180 : vector<2x12xf32>
    %183 = arith.divf %181, %182 : vector<2x12xf32>
    %184 = vector.extract_strided_slice %177 {offsets = [0, 12], sizes = [2, 4], strides = [1, 1]} : vector<2x16xf32> to vector<2x4xf32>
    %185 = math.tanh %184 : vector<2x4xf32>
    %186 = vector.extract_strided_slice %183 {offsets = [0, 0], sizes = [2, 4], strides = [1, 1]} : vector<2x12xf32> to vector<2x4xf32>
    %187 = vector.extract_strided_slice %183 {offsets = [0, 4], sizes = [2, 4], strides = [1, 1]} : vector<2x12xf32> to vector<2x4xf32>
    %188 = vector.extract_strided_slice %183 {offsets = [0, 8], sizes = [2, 4], strides = [1, 1]} : vector<2x12xf32> to vector<2x4xf32>
    %189 = arith.mulf %187, %6 : vector<2x4xf32>
    %190 = arith.mulf %186, %185 : vector<2x4xf32>
    %191 = arith.addf %189, %190 : vector<2x4xf32>
    %192 = math.tanh %191 : vector<2x4xf32>
    %193 = arith.mulf %188, %192 : vector<2x4xf32>
    %194 = vector.extract_strided_slice %193 {offsets = [1, 0], sizes = [1, 4], strides = [1, 1]} : vector<2x4xf32> to vector<1x4xf32>
    %c0_44 = arith.constant 0 : index
    %c0_45 = arith.constant 0 : index
    %195 = vector.load %arg11[%c0_44, %c0_45] : memref<8x4xf32, #tpu.memory_space<vmem>>, vector<1x4xf32>
    tpu.vector_store %arg11[%c0_44, %c0_45], %194 {strides = array<i32>} : memref<8x4xf32, #tpu.memory_space<vmem>>, vector<1x4xf32>,
    %196 = vector.extract_strided_slice %174 {offsets = [2, 0], sizes = [2, 16], strides = [1, 1]} : vector<16x16xf32> to vector<2x16xf32>
    %cst_46 = arith.constant dense<0.000000e+00> : vector<2x16xf32>
    %197 = tpu.matmul %193, %4, %cst_46 {dimension_numbers = #tpu.dot_dimension_numbers<[1], [0], [0], [1], [0, 0, 1, 1], [], []>} : vector<2x4xf32>, vector<4x16xf32>, vector<2x16xf32> -> vector<2x16xf32>
    %198 = arith.addf %196, %197 : vector<2x16xf32>
    %199 = vector.extract_strided_slice %198 {offsets = [0, 0], sizes = [2, 12], strides = [1, 1]} : vector<2x16xf32> to vector<2x12xf32>
    %200 = arith.negf %199 : vector<2x12xf32>
    %201 = math.exp %200 : vector<2x12xf32>
    %cst_47 = arith.constant 1.000000e+00 : f32
    %202 = vector.broadcast %cst_47 : f32 to vector<2x12xf32>
    %203 = arith.addf %202, %201 : vector<2x12xf32>
    %204 = arith.divf %202, %203 : vector<2x12xf32>
    %205 = vector.extract_strided_slice %198 {offsets = [0, 12], sizes = [2, 4], strides = [1, 1]} : vector<2x16xf32> to vector<2x4xf32>
    %206 = math.tanh %205 : vector<2x4xf32>
    %207 = vector.extract_strided_slice %204 {offsets = [0, 0], sizes = [2, 4], strides = [1, 1]} : vector<2x12xf32> to vector<2x4xf32>
    %208 = vector.extract_strided_slice %204 {offsets = [0, 4], sizes = [2, 4], strides = [1, 1]} : vector<2x12xf32> to vector<2x4xf32>
    %209 = vector.extract_strided_slice %204 {offsets = [0, 8], sizes = [2, 4], strides = [1, 1]} : vector<2x12xf32> to vector<2x4xf32>
    %210 = arith.mulf %208, %191 : vector<2x4xf32>
    %211 = arith.mulf %207, %206 : vector<2x4xf32>
    %212 = arith.addf %210, %211 : vector<2x4xf32>
    %213 = math.tanh %212 : vector<2x4xf32>
    %214 = arith.mulf %209, %213 : vector<2x4xf32>
    %215 = vector.extract_strided_slice %214 {offsets = [1, 0], sizes = [1, 4], strides = [1, 1]} : vector<2x4xf32> to vector<1x4xf32>
    %c1 = arith.constant 1 : index
    %c0_48 = arith.constant 0 : index
    %216 = vector.load %arg11[%c1, %c0_48] : memref<8x4xf32, #tpu.memory_space<vmem>>, vector<1x4xf32>
    tpu.vector_store %arg11[%c1, %c0_48], %215 {strides = array<i32>} : memref<8x4xf32, #tpu.memory_space<vmem>>, vector<1x4xf32>,
    %217 = vector.extract_strided_slice %174 {offsets = [4, 0], sizes = [2, 16], strides = [1, 1]} : vector<16x16xf32> to vector<2x16xf32>
    %cst_49 = arith.constant dense<0.000000e+00> : vector<2x16xf32>
    %218 = tpu.matmul %214, %4, %cst_49 {dimension_numbers = #tpu.dot_dimension_numbers<[1], [0], [0], [1], [0, 0, 1, 1], [], []>} : vector<2x4xf32>, vector<4x16xf32>, vector<2x16xf32> -> vector<2x16xf32>
    %219 = arith.addf %217, %218 : vector<2x16xf32>
    %220 = vector.extract_strided_slice %219 {offsets = [0, 0], sizes = [2, 12], strides = [1, 1]} : vector<2x16xf32> to vector<2x12xf32>
    %221 = arith.negf %220 : vector<2x12xf32>
    %222 = math.exp %221 : vector<2x12xf32>
    %cst_50 = arith.constant 1.000000e+00 : f32
    %223 = vector.broadcast %cst_50 : f32 to vector<2x12xf32>
    %224 = arith.addf %223, %222 : vector<2x12xf32>
    %225 = arith.divf %223, %224 : vector<2x12xf32>
    %226 = vector.extract_strided_slice %219 {offsets = [0, 12], sizes = [2, 4], strides = [1, 1]} : vector<2x16xf32> to vector<2x4xf32>
    %227 = math.tanh %226 : vector<2x4xf32>
    %228 = vector.extract_strided_slice %225 {offsets = [0, 0], sizes = [2, 4], strides = [1, 1]} : vector<2x12xf32> to vector<2x4xf32>
    %229 = vector.extract_strided_slice %225 {offsets = [0, 4], sizes = [2, 4], strides = [1, 1]} : vector<2x12xf32> to vector<2x4xf32>
    %230 = vector.extract_strided_slice %225 {offsets = [0, 8], sizes = [2, 4], strides = [1, 1]} : vector<2x12xf32> to vector<2x4xf32>
    %231 = arith.mulf %229, %212 : vector<2x4xf32>
    %232 = arith.mulf %228, %227 : vector<2x4xf32>
    %233 = arith.addf %231, %232 : vector<2x4xf32>
    %234 = math.tanh %233 : vector<2x4xf32>
    %235 = arith.mulf %230, %234 : vector<2x4xf32>
    %236 = vector.extract_strided_slice %235 {offsets = [1, 0], sizes = [1, 4], strides = [1, 1]} : vector<2x4xf32> to vector<1x4xf32>
    %c2_51 = arith.constant 2 : index
    %c0_52 = arith.constant 0 : index
    %237 = vector.load %arg11[%c2_51, %c0_52] : memref<8x4xf32, #tpu.memory_space<vmem>>, vector<1x4xf32>
    tpu.vector_store %arg11[%c2_51, %c0_52], %236 {strides = array<i32>} : memref<8x4xf32, #tpu.memory_space<vmem>>, vector<1x4xf32>,
    %238 = vector.extract_strided_slice %174 {offsets = [6, 0], sizes = [2, 16], strides = [1, 1]} : vector<16x16xf32> to vector<2x16xf32>
    %cst_53 = arith.constant dense<0.000000e+00> : vector<2x16xf32>
    %239 = tpu.matmul %235, %4, %cst_53 {dimension_numbers = #tpu.dot_dimension_numbers<[1], [0], [0], [1], [0, 0, 1, 1], [], []>} : vector<2x4xf32>, vector<4x16xf32>, vector<2x16xf32> -> vector<2x16xf32>
    %240 = arith.addf %238, %239 : vector<2x16xf32>
    %241 = vector.extract_strided_slice %240 {offsets = [0, 0], sizes = [2, 12], strides = [1, 1]} : vector<2x16xf32> to vector<2x12xf32>
    %242 = arith.negf %241 : vector<2x12xf32>
    %243 = math.exp %242 : vector<2x12xf32>
    %cst_54 = arith.constant 1.000000e+00 : f32
    %244 = vector.broadcast %cst_54 : f32 to vector<2x12xf32>
    %245 = arith.addf %244, %243 : vector<2x12xf32>
    %246 = arith.divf %244, %245 : vector<2x12xf32>
    %247 = vector.extract_strided_slice %240 {offsets = [0, 12], sizes = [2, 4], strides = [1, 1]} : vector<2x16xf32> to vector<2x4xf32>
    %248 = math.tanh %247 : vector<2x4xf32>
    %249 = vector.extract_strided_slice %246 {offsets = [0, 0], sizes = [2, 4], strides = [1, 1]} : vector<2x12xf32> to vector<2x4xf32>
    %250 = vector.extract_strided_slice %246 {offsets = [0, 4], sizes = [2, 4], strides = [1, 1]} : vector<2x12xf32> to vector<2x4xf32>
    %251 = vector.extract_strided_slice %246 {offsets = [0, 8], sizes = [2, 4], strides = [1, 1]} : vector<2x12xf32> to vector<2x4xf32>
    %252 = arith.mulf %250, %233 : vector<2x4xf32>
    %253 = arith.mulf %249, %248 : vector<2x4xf32>
    %254 = arith.addf %252, %253 : vector<2x4xf32>
    %255 = math.tanh %254 : vector<2x4xf32>
    %256 = arith.mulf %251, %255 : vector<2x4xf32>
    %257 = vector.extract_strided_slice %256 {offsets = [1, 0], sizes = [1, 4], strides = [1, 1]} : vector<2x4xf32> to vector<1x4xf32>
    %c3 = arith.constant 3 : index
    %c0_55 = arith.constant 0 : index
    %258 = vector.load %arg11[%c3, %c0_55] : memref<8x4xf32, #tpu.memory_space<vmem>>, vector<1x4xf32>
    tpu.vector_store %arg11[%c3, %c0_55], %257 {strides = array<i32>} : memref<8x4xf32, #tpu.memory_space<vmem>>, vector<1x4xf32>,
    %259 = vector.extract_strided_slice %174 {offsets = [8, 0], sizes = [2, 16], strides = [1, 1]} : vector<16x16xf32> to vector<2x16xf32>
    %cst_56 = arith.constant dense<0.000000e+00> : vector<2x16xf32>
    %260 = tpu.matmul %256, %4, %cst_56 {dimension_numbers = #tpu.dot_dimension_numbers<[1], [0], [0], [1], [0, 0, 1, 1], [], []>} : vector<2x4xf32>, vector<4x16xf32>, vector<2x16xf32> -> vector<2x16xf32>
    %261 = arith.addf %259, %260 : vector<2x16xf32>
    %262 = vector.extract_strided_slice %261 {offsets = [0, 0], sizes = [2, 12], strides = [1, 1]} : vector<2x16xf32> to vector<2x12xf32>
    %263 = arith.negf %262 : vector<2x12xf32>
    %264 = math.exp %263 : vector<2x12xf32>
    %cst_57 = arith.constant 1.000000e+00 : f32
    %265 = vector.broadcast %cst_57 : f32 to vector<2x12xf32>
    %266 = arith.addf %265, %264 : vector<2x12xf32>
    %267 = arith.divf %265, %266 : vector<2x12xf32>
    %268 = vector.extract_strided_slice %261 {offsets = [0, 12], sizes = [2, 4], strides = [1, 1]} : vector<2x16xf32> to vector<2x4xf32>
    %269 = math.tanh %268 : vector<2x4xf32>
    %270 = vector.extract_strided_slice %267 {offsets = [0, 0], sizes = [2, 4], strides = [1, 1]} : vector<2x12xf32> to vector<2x4xf32>
    %271 = vector.extract_strided_slice %267 {offsets = [0, 4], sizes = [2, 4], strides = [1, 1]} : vector<2x12xf32> to vector<2x4xf32>
    %272 = vector.extract_strided_slice %267 {offsets = [0, 8], sizes = [2, 4], strides = [1, 1]} : vector<2x12xf32> to vector<2x4xf32>
    %273 = arith.mulf %271, %254 : vector<2x4xf32>
    %274 = arith.mulf %270, %269 : vector<2x4xf32>
    %275 = arith.addf %273, %274 : vector<2x4xf32>
    %276 = math.tanh %275 : vector<2x4xf32>
    %277 = arith.mulf %272, %276 : vector<2x4xf32>
    %278 = vector.extract_strided_slice %277 {offsets = [1, 0], sizes = [1, 4], strides = [1, 1]} : vector<2x4xf32> to vector<1x4xf32>
    %c4_58 = arith.constant 4 : index
    %c0_59 = arith.constant 0 : index
    %279 = vector.load %arg11[%c4_58, %c0_59] : memref<8x4xf32, #tpu.memory_space<vmem>>, vector<1x4xf32>
    tpu.vector_store %arg11[%c4_58, %c0_59], %278 {strides = array<i32>} : memref<8x4xf32, #tpu.memory_space<vmem>>, vector<1x4xf32>,
    %280 = vector.extract_strided_slice %174 {offsets = [10, 0], sizes = [2, 16], strides = [1, 1]} : vector<16x16xf32> to vector<2x16xf32>
    %cst_60 = arith.constant dense<0.000000e+00> : vector<2x16xf32>
    %281 = tpu.matmul %277, %4, %cst_60 {dimension_numbers = #tpu.dot_dimension_numbers<[1], [0], [0], [1], [0, 0, 1, 1], [], []>} : vector<2x4xf32>, vector<4x16xf32>, vector<2x16xf32> -> vector<2x16xf32>
    %282 = arith.addf %280, %281 : vector<2x16xf32>
    %283 = vector.extract_strided_slice %282 {offsets = [0, 0], sizes = [2, 12], strides = [1, 1]} : vector<2x16xf32> to vector<2x12xf32>
    %284 = arith.negf %283 : vector<2x12xf32>
    %285 = math.exp %284 : vector<2x12xf32>
    %cst_61 = arith.constant 1.000000e+00 : f32
    %286 = vector.broadcast %cst_61 : f32 to vector<2x12xf32>
    %287 = arith.addf %286, %285 : vector<2x12xf32>
    %288 = arith.divf %286, %287 : vector<2x12xf32>
    %289 = vector.extract_strided_slice %282 {offsets = [0, 12], sizes = [2, 4], strides = [1, 1]} : vector<2x16xf32> to vector<2x4xf32>
    %290 = math.tanh %289 : vector<2x4xf32>
    %291 = vector.extract_strided_slice %288 {offsets = [0, 0], sizes = [2, 4], strides = [1, 1]} : vector<2x12xf32> to vector<2x4xf32>
    %292 = vector.extract_strided_slice %288 {offsets = [0, 4], sizes = [2, 4], strides = [1, 1]} : vector<2x12xf32> to vector<2x4xf32>
    %293 = vector.extract_strided_slice %288 {offsets = [0, 8], sizes = [2, 4], strides = [1, 1]} : vector<2x12xf32> to vector<2x4xf32>
    %294 = arith.mulf %292, %275 : vector<2x4xf32>
    %295 = arith.mulf %291, %290 : vector<2x4xf32>
    %296 = arith.addf %294, %295 : vector<2x4xf32>
    %297 = math.tanh %296 : vector<2x4xf32>
    %298 = arith.mulf %293, %297 : vector<2x4xf32>
    %299 = vector.extract_strided_slice %298 {offsets = [1, 0], sizes = [1, 4], strides = [1, 1]} : vector<2x4xf32> to vector<1x4xf32>
    %c5 = arith.constant 5 : index
    %c0_62 = arith.constant 0 : index
    %300 = vector.load %arg11[%c5, %c0_62] : memref<8x4xf32, #tpu.memory_space<vmem>>, vector<1x4xf32>
    tpu.vector_store %arg11[%c5, %c0_62], %299 {strides = array<i32>} : memref<8x4xf32, #tpu.memory_space<vmem>>, vector<1x4xf32>,
    %301 = vector.extract_strided_slice %174 {offsets = [12, 0], sizes = [2, 16], strides = [1, 1]} : vector<16x16xf32> to vector<2x16xf32>
    %cst_63 = arith.constant dense<0.000000e+00> : vector<2x16xf32>
    %302 = tpu.matmul %298, %4, %cst_63 {dimension_numbers = #tpu.dot_dimension_numbers<[1], [0], [0], [1], [0, 0, 1, 1], [], []>} : vector<2x4xf32>, vector<4x16xf32>, vector<2x16xf32> -> vector<2x16xf32>
    %303 = arith.addf %301, %302 : vector<2x16xf32>
    %304 = vector.extract_strided_slice %303 {offsets = [0, 0], sizes = [2, 12], strides = [1, 1]} : vector<2x16xf32> to vector<2x12xf32>
    %305 = arith.negf %304 : vector<2x12xf32>
    %306 = math.exp %305 : vector<2x12xf32>
    %cst_64 = arith.constant 1.000000e+00 : f32
    %307 = vector.broadcast %cst_64 : f32 to vector<2x12xf32>
    %308 = arith.addf %307, %306 : vector<2x12xf32>
    %309 = arith.divf %307, %308 : vector<2x12xf32>
    %310 = vector.extract_strided_slice %303 {offsets = [0, 12], sizes = [2, 4], strides = [1, 1]} : vector<2x16xf32> to vector<2x4xf32>
    %311 = math.tanh %310 : vector<2x4xf32>
    %312 = vector.extract_strided_slice %309 {offsets = [0, 0], sizes = [2, 4], strides = [1, 1]} : vector<2x12xf32> to vector<2x4xf32>
    %313 = vector.extract_strided_slice %309 {offsets = [0, 4], sizes = [2, 4], strides = [1, 1]} : vector<2x12xf32> to vector<2x4xf32>
    %314 = vector.extract_strided_slice %309 {offsets = [0, 8], sizes = [2, 4], strides = [1, 1]} : vector<2x12xf32> to vector<2x4xf32>
    %315 = arith.mulf %313, %296 : vector<2x4xf32>
    %316 = arith.mulf %312, %311 : vector<2x4xf32>
    %317 = arith.addf %315, %316 : vector<2x4xf32>
    %318 = math.tanh %317 : vector<2x4xf32>
    %319 = arith.mulf %314, %318 : vector<2x4xf32>
    %320 = vector.extract_strided_slice %319 {offsets = [1, 0], sizes = [1, 4], strides = [1, 1]} : vector<2x4xf32> to vector<1x4xf32>
    %c6_65 = arith.constant 6 : index
    %c0_66 = arith.constant 0 : index
    %321 = vector.load %arg11[%c6_65, %c0_66] : memref<8x4xf32, #tpu.memory_space<vmem>>, vector<1x4xf32>
    tpu.vector_store %arg11[%c6_65, %c0_66], %320 {strides = array<i32>} : memref<8x4xf32, #tpu.memory_space<vmem>>, vector<1x4xf32>,
    %322 = vector.extract_strided_slice %174 {offsets = [14, 0], sizes = [2, 16], strides = [1, 1]} : vector<16x16xf32> to vector<2x16xf32>
    %cst_67 = arith.constant dense<0.000000e+00> : vector<2x16xf32>
    %323 = tpu.matmul %319, %4, %cst_67 {dimension_numbers = #tpu.dot_dimension_numbers<[1], [0], [0], [1], [0, 0, 1, 1], [], []>} : vector<2x4xf32>, vector<4x16xf32>, vector<2x16xf32> -> vector<2x16xf32>
    %324 = arith.addf %322, %323 : vector<2x16xf32>
    %325 = vector.extract_strided_slice %324 {offsets = [0, 0], sizes = [2, 12], strides = [1, 1]} : vector<2x16xf32> to vector<2x12xf32>
    %326 = arith.negf %325 : vector<2x12xf32>
    %327 = math.exp %326 : vector<2x12xf32>
    %cst_68 = arith.constant 1.000000e+00 : f32
    %328 = vector.broadcast %cst_68 : f32 to vector<2x12xf32>
    %329 = arith.addf %328, %327 : vector<2x12xf32>
    %330 = arith.divf %328, %329 : vector<2x12xf32>
    %331 = vector.extract_strided_slice %324 {offsets = [0, 12], sizes = [2, 4], strides = [1, 1]} : vector<2x16xf32> to vector<2x4xf32>
    %332 = math.tanh %331 : vector<2x4xf32>
    %333 = vector.extract_strided_slice %330 {offsets = [0, 0], sizes = [2, 4], strides = [1, 1]} : vector<2x12xf32> to vector<2x4xf32>
    %334 = vector.extract_strided_slice %330 {offsets = [0, 4], sizes = [2, 4], strides = [1, 1]} : vector<2x12xf32> to vector<2x4xf32>
    %335 = vector.extract_strided_slice %330 {offsets = [0, 8], sizes = [2, 4], strides = [1, 1]} : vector<2x12xf32> to vector<2x4xf32>
    %336 = arith.mulf %334, %317 : vector<2x4xf32>
    %337 = arith.mulf %333, %332 : vector<2x4xf32>
    %338 = arith.addf %336, %337 : vector<2x4xf32>
    %339 = math.tanh %338 : vector<2x4xf32>
    %340 = arith.mulf %335, %339 : vector<2x4xf32>
    %341 = vector.extract_strided_slice %340 {offsets = [1, 0], sizes = [1, 4], strides = [1, 1]} : vector<2x4xf32> to vector<1x4xf32>
    %c7 = arith.constant 7 : index
    %c0_69 = arith.constant 0 : index
    %342 = vector.load %arg11[%c7, %c0_69] : memref<8x4xf32, #tpu.memory_space<vmem>>, vector<1x4xf32>
    tpu.vector_store %arg11[%c7, %c0_69], %341 {strides = array<i32>} : memref<8x4xf32, #tpu.memory_space<vmem>>, vector<1x4xf32>,
    %c0_70 = arith.constant 0 : index
    %c0_71 = arith.constant 0 : index
    %343 = vector.load %arg11[%c0_70, %c0_71] : memref<8x4xf32, #tpu.memory_space<vmem>>, vector<8x4xf32>
    %c0_72 = arith.constant 0 : index
    %c0_73 = arith.constant 0 : index
    %344 = vector.load %arg7[%c0_72, %c0_73] : memref<4x2xf32, #tpu.memory_space<vmem>>, vector<4x2xf32>
    %cst_74 = arith.constant dense<0.000000e+00> : vector<8x2xf32>
    %345 = tpu.matmul %343, %344, %cst_74 {dimension_numbers = #tpu.dot_dimension_numbers<[1], [0], [0], [1], [0, 0, 1, 1], [], []>} : vector<8x4xf32>, vector<4x2xf32>, vector<8x2xf32> -> vector<8x2xf32>
    %c0_75 = arith.constant 0 : index
    %c0_76 = arith.constant 0 : index
    %346 = vector.load %arg8[%c0_75, %c0_76] : memref<1x2xf32, #tpu.memory_space<vmem>>, vector<1x2xf32>
    %347 = vector.broadcast %346 : vector<1x2xf32> to vector<8x2xf32>
    %348 = arith.addf %345, %347 : vector<8x2xf32>
    %c0_77 = arith.constant 0 : index
    %c0_78 = arith.constant 0 : index
    %349 = vector.load %arg9[%c0_77, %c0_78] : memref<8x2xf32, #tpu.memory_space<vmem>>, vector<8x2xf32>
    tpu.vector_store %arg9[%c0_77, %c0_78], %348 {strides = array<i32>} : memref<8x2xf32, #tpu.memory_space<vmem>>, vector<8x2xf32>,
    return
  }
}

</mosaic_0001>

<llo_original>
// kernel: rnn_model_forward.1
$region0: #{rnn_model_forward.1}
  #allocation0 [shape = 'u32[]', space=smem, size = 0x4, offset = 0x4, fixed_abs, tag = 'smem constant byte address 0x4 - core index']
  #allocation1 [shape = 'u32[72,128]{1,0:T(1,128)}', space=vmem, size = 0x9000, scoped, tag = 'internal scratch']
  #allocation2 [shape = 'f32[16,4]{1,0:T(8,128)}', space=vmem, size = 0x2000, scoped, tag = 'scratch operand']
  #allocation3 [shape = 'f32[8,4]{1,0:T(8,128)}', space=vmem, size = 0x1000, scoped, tag = 'scratch operand']
  %s0 = inlined_call_operand.hbm [shape: f32[16,16], index: 0, kind: input, shape index: {}]
  %s1 = inlined_call_operand.hbm [shape: f32[16,16], index: 1, kind: input, shape index: {}]
  %s2 = inlined_call_operand.vmem [shape: f32[4,16], index: 2, kind: input, shape index: {}]
  %s3 = inlined_call_operand.vmem [shape: f32[1,16], index: 3, kind: input, shape index: {}]
  %s4 = inlined_call_operand.vmem [shape: f32[4,16], index: 4, kind: input, shape index: {}]
  %s5 = inlined_call_operand.hbm [shape: f32[4,16], index: 5, kind: input, shape index: {}]
  %s6 = inlined_call_operand.vmem [shape: f32[1,16], index: 6, kind: input, shape index: {}]
  %s7 = inlined_call_operand.vmem [shape: f32[4,2], index: 7, kind: input, shape index: {}]
  %s8 = inlined_call_operand.hbm [shape: f32[1,2], index: 8, kind: input, shape index: {}]
  %s9 = inlined_call_operand.vmem [shape: f32[8,2], index: 9, kind: output, shape index: {}]
  %s10 = sld [smem:[#allocation0]]
  $region62: #{rnn_model_forward.1} parent=0
    _
  %s12 = ssub.s32 1, %s10
  %s13 = scalar_select 0, %s12, %s10
  $region1: #{rnn_model_forward.1} parent=0
    #allocation4 [shape = 'u8[8192]{0}', space=vmem, size = 0x2000, scoped, tag = 'input window, operand 0, single buffered']
    #allocation5 [shape = 's32[1]{0}', space=sflag, size = 0x4, scoped, tag = 'scoped memory for rnn_model_forward.1']
    #allocation6 [shape = 'u8[8192]{0}', space=vmem, size = 0x2000, scoped, tag = 'input window, operand 1, single buffered']
    #allocation7 [shape = 's32[1]{0}', space=sflag, size = 0x4, scoped, tag = 'scoped memory for rnn_model_forward.1']
    #allocation8 [shape = 'u8[2048]{0}', space=vmem, size = 0x800, scoped, tag = 'input window, operand 5, single buffered']
    #allocation9 [shape = 'u8[512]{0}', space=vmem, size = 0x400, scoped, tag = 'input window, operand 8, single buffered']
    #allocation10 [shape = 's32[1]{0}', space=sflag, size = 0x4, scoped, tag = 'scoped memory for rnn_model_forward.1']
    %14 = vsyncpa [#allocation5], 0
    %15 = vsyncpa [#allocation7], 0
    %16 = vsyncpa [#allocation10], 0
    // Predicated region
    $region2: #{rnn_model_forward.1} parent=1 // pred_check
      _
    $region3: #{rnn_model_forward.1} parent=1 // pred_check_branch
      %18 = sbr.rel (0) target = $region5
    $region4: #{rnn_model_forward.1} parent=1 // pred_region
      %20 = vsyncadd [#allocation5], 0
      %s21 = sshll.u32 %s0, 4
      %s22 = int_to_ptr.hbm [resolvable:$true] %s21
      %s23 = sshll.u32 [#allocation4], 4
      %s24 = int_to_ptr.vmem [resolvable:$true] %s23
      %29 = dma.hbm_to_vmem [thread:$0]  %s22, 256, %s24, [#allocation5], 128, 128, 8
    $region5: #{rnn_model_forward.1} parent=1 // pred_fallthru
      _
    // Predicated region
    $region6: #{rnn_model_forward.1} parent=1 // pred_check
      _
    $region7: #{rnn_model_forward.1} parent=1 // pred_check_branch
      %31 = sbr.rel (0) target = $region9
    $region8: #{rnn_model_forward.1} parent=1 // pred_region
      %33 = vsyncadd [#allocation7], 0
      %s34 = sshll.u32 %s1, 4
      %s35 = int_to_ptr.hbm [resolvable:$true] %s34
      %s36 = sshll.u32 [#allocation6], 4
      %s37 = int_to_ptr.vmem [resolvable:$true] %s36
      %42 = dma.hbm_to_vmem [thread:$0]  %s35, 256, %s37, [#allocation7], 128, 128, 8
    $region9: #{rnn_model_forward.1} parent=1 // pred_fallthru
      _
    // Predicated region
    $region10: #{rnn_model_forward.1} parent=1 // pred_check
      _
    $region11: #{rnn_model_forward.1} parent=1 // pred_check_branch
      %44 = sbr.rel (0) target = $region13
    $region12: #{rnn_model_forward.1} parent=1 // pred_region
      _
    $region13: #{rnn_model_forward.1} parent=1 // pred_fallthru
      _
    // Predicated region
    $region14: #{rnn_model_forward.1} parent=1 // pred_check
      _
    $region15: #{rnn_model_forward.1} parent=1 // pred_check_branch
      %46 = sbr.rel (0) target = $region17
    $region16: #{rnn_model_forward.1} parent=1 // pred_region
      _
    $region17: #{rnn_model_forward.1} parent=1 // pred_fallthru
      _
    // Predicated region
    $region18: #{rnn_model_forward.1} parent=1 // pred_check
      _
    $region19: #{rnn_model_forward.1} parent=1 // pred_check_branch
      %48 = sbr.rel (0) target = $region21
    $region20: #{rnn_model_forward.1} parent=1 // pred_region
      _
    $region21: #{rnn_model_forward.1} parent=1 // pred_fallthru
      _
    // Predicated region
    $region22: #{rnn_model_forward.1} parent=1 // pred_check
      _
    $region23: #{rnn_model_forward.1} parent=1 // pred_check_branch
      %50 = sbr.rel (0) target = $region25
    $region24: #{rnn_model_forward.1} parent=1 // pred_region
      %52 = vsyncadd [#allocation7], 0
      %s54 = sshll.u32 %s5, 4
      %s55 = int_to_ptr.hbm [resolvable:$true] %s54
      %s56 = sshll.u32 [#allocation8], 4
      %s57 = int_to_ptr.vmem [resolvable:$true] %s56
      %59 = dma.hbm_to_vmem [thread:$0]  %s55, 64, %s57, [#allocation7]
    $region25: #{rnn_model_forward.1} parent=1 // pred_fallthru
      _
    // Predicated region
    $region26: #{rnn_model_forward.1} parent=1 // pred_check
      _
    $region27: #{rnn_model_forward.1} parent=1 // pred_check_branch
      %61 = sbr.rel (0) target = $region29
    $region28: #{rnn_model_forward.1} parent=1 // pred_region
      _
    $region29: #{rnn_model_forward.1} parent=1 // pred_fallthru
      _
    // Predicated region
    $region30: #{rnn_model_forward.1} parent=1 // pred_check
      _
    $region31: #{rnn_model_forward.1} parent=1 // pred_check_branch
      %63 = sbr.rel (0) target = $region33
    $region32: #{rnn_model_forward.1} parent=1 // pred_region
      _
    $region33: #{rnn_model_forward.1} parent=1 // pred_fallthru
      _
    // Predicated region
    $region34: #{rnn_model_forward.1} parent=1 // pred_check
      _
    $region35: #{rnn_model_forward.1} parent=1 // pred_check_branch
      %65 = sbr.rel (0) target = $region37
    $region36: #{rnn_model_forward.1} parent=1 // pred_region
      %67 = vsyncadd [#allocation10], 0
      %s69 = sshll.u32 %s8, 4
      %s70 = int_to_ptr.hbm [resolvable:$true] %s69
      %s71 = sshll.u32 [#allocation9], 4
      %s72 = int_to_ptr.vmem [resolvable:$true] %s71
      %74 = dma.hbm_to_vmem [thread:$0]  %s70, 16, %s72, [#allocation10]
    $region37: #{rnn_model_forward.1} parent=1 // pred_fallthru
      _
    // Predicated region
    $region38: #{rnn_model_forward.1} parent=1 // pred_check
      _
    $region39: #{rnn_model_forward.1} parent=1 // pred_check_branch
      %76 = sbr.rel (0) target = $region41
    $region40: #{rnn_model_forward.1} parent=1 // pred_region
      %78 = dma.done [#allocation5], 256
    $region41: #{rnn_model_forward.1} parent=1 // pred_fallthru
      _
    // Predicated region
    $region42: #{rnn_model_forward.1} parent=1 // pred_check
      _
    $region43: #{rnn_model_forward.1} parent=1 // pred_check_branch
      %80 = sbr.rel (0) target = $region45
    $region44: #{rnn_model_forward.1} parent=1 // pred_region
      %82 = dma.done [#allocation7], 256
    $region45: #{rnn_model_forward.1} parent=1 // pred_fallthru
      _
    // Predicated region
    $region46: #{rnn_model_forward.1} parent=1 // pred_check
      _
    $region47: #{rnn_model_forward.1} parent=1 // pred_check_branch
      %84 = sbr.rel (0) target = $region49
    $region48: #{rnn_model_forward.1} parent=1 // pred_region
      %86 = dma.done [#allocation7], 64
    $region49: #{rnn_model_forward.1} parent=1 // pred_fallthru
      _
    // Predicated region
    $region50: #{rnn_model_forward.1} parent=1 // pred_check
      _
    $region51: #{rnn_model_forward.1} parent=1 // pred_check_branch
      %88 = sbr.rel (0) target = $region53
    $region52: #{rnn_model_forward.1} parent=1 // pred_region
      %90 = dma.done [#allocation10], 16
    $region53: #{rnn_model_forward.1} parent=1 // pred_fallthru
      _
    %v91 = vld [vmem:[#allocation6] sm:$0xff]
    %v92 = vld [vmem:[#allocation6 + $0x8] sm:$0xff]
    %v93 = vld [vmem:[%s2] sm:$0xf]
    %v94 = vld [vmem:[%s3] sm:$0x1]
    %v95 = vld [vmem:[%s4] sm:$0xf]
    %v96 = vld [vmem:[#allocation8] sm:$0xf]
    %v97 = vld [vmem:[%s6] sm:$0x1]
    %v98 = vld [vmem:[#allocation4] sm:$0xff]
    %v99 = vld [vmem:[#allocation4 + $0x8] sm:$0xff]
    %v101 = vperm.slane %v94, 0
    %vm103 = vcmask 130048
    %v105 = vsel %vm103, %v98, 0
    %v108 = vsel %vm103, %v99, 0
    %110 = vmatpush.msra.mxu0 0.0
    %111 = vmatpush.msra.mxu0 0.0
    %112 = vmatpush.msra.mxu0 0.0
    %113 = vmatpush.msra.mxu0 0.0
    %114 = vmatpush.msra.mxu0 0.0
    %115 = vmatpush.msra.mxu0 0.0
    %116 = vmatpush.msra.mxu0 0.0
    %117 = vmatpush.msra.mxu0 0.0
    %118 = vmatpush.msra.mxu0 0.0
    %119 = vmatpush.msra.mxu0 0.0
    %120 = vmatpush.msra.mxu0 0.0
    %121 = vmatpush.msra.mxu0 0.0
    %122 = vmatpush.msra.mxu0 0.0
    %123 = vmatpush.msra.mxu0 0.0
    %124 = vmatpush.msra.mxu0 %v92
    %125 = vmatpush.msra.mxu0 %v91
    %126 = vmatmul.f32.gmra.mxu0 %v105
    %v127 = vpop.f32.mrf.mxu0
    %v128 = vadd.f32 %v101, %v127
    %129 = vmatmul.f32.gmra.mxu0 %v108
    %v130 = vpop.f32.mrf.mxu0
    %v131 = vadd.f32 %v101, %v130
    %132 = vdwg.mxu0
    %vm133 = vcmask 31744
    %v135 = vsel %vm133, 0.0, 0
    %vm137 = vcmask 1043456
    %v139 = vsel %vm137, %v93, 0
    %141 = vmatpush.msra.mxu0 0.0
    %142 = vmatpush.msra.mxu0 0.0
    %143 = vmatpush.msra.mxu0 0.0
    %144 = vmatpush.msra.mxu0 0.0
    %145 = vmatpush.msra.mxu0 0.0
    %146 = vmatpush.msra.mxu0 0.0
    %147 = vmatpush.msra.mxu0 0.0
    %148 = vmatpush.msra.mxu0 0.0
    %149 = vmatpush.msra.mxu0 0.0
    %150 = vmatpush.msra.mxu0 0.0
    %151 = vmatpush.msra.mxu0 0.0
    %152 = vmatpush.msra.mxu0 0.0
    %153 = vmatpush.msra.mxu0 0.0
    %154 = vmatpush.msra.mxu0 0.0
    %155 = vmatpush.msra.mxu0 0.0
    %156 = vmatpush.msra.mxu0 %v139
    %157 = vmatmul.f32.gmra.mxu0 %v135
    %v158 = vpop.f32.mrf.mxu0
    %v159 = vadd.f32 0.0, %v158
    %160 = vdwg.mxu0
    %v161 = vadd.f32 %v128, %v159
    %v162 = vxor.u32 %v161, 2147483648
    %v163 = vmul.f32 %v162, 1.442695
    %v164 = vpow.pop %v163
    %v165 = vadd.f32 %v164, 1.0
    %v166 = vrcp.pop %v165
    %v167 = vmul.f32 %v165, %v166
    %v168 = vsub.f32 1.0, %v167
    %v169 = vmul.f32 %v166, %v168
    %v170 = vadd.f32 %v166, %v169
    %vm171 = vweird.f32 %v165
    %vm172 = vweird.f32 %v166
    %vm173 = vmor %vm171, %vm172
    %v174 = vsel %vm173, %v166, %v170
    %v175 = vand.u32 2147483647, %v165
    %vm176 = vcmp.eq.f32.partialorder %v175, 8.507059e+37
    %v177 = vand.u32 %v165, 2147483648
    %v178 = vor.u32 1.1754944e-38, %v177
    %v179 = vsel %vm176, %v178, %v174
    %v180 = vmul.f32 1.0, %v179
    %v181 = vtanh.pop %v161
    %v182 = vmul.f32 %v180, 0.0
    %184 = vrot.lane.b32.xlu0 %v181, 116
    %v185 = vpop.permute.xlu0 %184
    %v187 = vmul.f32 %v180, %v185
    %189 = vrot.lane.b32.xlu0 %v187, 4
    %v190 = vpop.permute.xlu0 %189
    %v192 = vadd.f32 %v182, %v190
    %v193 = vtanh.pop %v192
    %195 = vrot.lane.b32.xlu0 %v193, 4
    %v196 = vpop.permute.xlu0 %195
    %v198 = vmul.f32 %v180, %v196
    %200 = vrot.lane.b32.xlu0 %v198, 120
    %v201 = vpop.permute.xlu0 %200
    %vm203 = vcmask 25600
    %204 = vst.msk [vmem:[#allocation2] sm:$0x3] %vm203, %v201
    %v205 = vsel %vm133, %v201, 0
    %207 = vmatpush.msra.mxu0 0.0
    %208 = vmatpush.msra.mxu0 0.0
    %209 = vmatpush.msra.mxu0 0.0
    %210 = vmatpush.msra.mxu0 0.0
    %211 = vmatpush.msra.mxu0 0.0
    %212 = vmatpush.msra.mxu0 0.0
    %213 = vmatpush.msra.mxu0 0.0
    %214 = vmatpush.msra.mxu0 0.0
    %215 = vmatpush.msra.mxu0 0.0
    %216 = vmatpush.msra.mxu0 0.0
    %217 = vmatpush.msra.mxu0 0.0
    %218 = vmatpush.msra.mxu0 0.0
    %219 = vmatpush.msra.mxu0 0.0
    %220 = vmatpush.msra.mxu0 0.0
    %221 = vmatpush.msra.mxu0 0.0
    %222 = vmatpush.msra.mxu0 %v139
    %223 = vmatmul.f32.gmra.mxu0 %v205
    %v224 = vpop.f32.mrf.mxu0
    %v225 = vadd.f32 0.0, %v224
    %226 = vdwg.mxu0
    %v228 = vrot.slane %v225, 6
    %v230 = vadd.f32 %v128, %v228
    %v231 = vxor.u32 %v230, 2147483648
    %v232 = vmul.f32 %v231, 1.442695
    %v233 = vpow.pop %v232
    %v234 = vadd.f32 %v233, 1.0
    %v235 = vrcp.pop %v234
    %v236 = vmul.f32 %v234, %v235
    %v237 = vsub.f32 1.0, %v236
    %v238 = vmul.f32 %v235, %v237
    %v239 = vadd.f32 %v235, %v238
    %vm240 = vweird.f32 %v234
    %vm241 = vweird.f32 %v235
    %vm242 = vmor %vm240, %vm241
    %v243 = vsel %vm242, %v235, %v239
    %v244 = vand.u32 2147483647, %v234
    %vm245 = vcmp.eq.f32.partialorder %v244, 8.507059e+37
    %v246 = vand.u32 %v234, 2147483648
    %v247 = vor.u32 1.1754944e-38, %v246
    %v248 = vsel %vm245, %v247, %v243
    %v249 = vmul.f32 1.0, %v248
    %v250 = vtanh.pop %v230
    %v252 = vrot.slane %v192, 6
    %v254 = vmul.f32 %v249, %v252
    %256 = vrot.lane.b32.xlu0 %v250, 116
    %v257 = vpop.permute.xlu0 %256
    %v259 = vmul.f32 %v249, %v257
    %261 = vrot.lane.b32.xlu0 %v259, 4
    %v262 = vpop.permute.xlu0 %261
    %v264 = vadd.f32 %v254, %v262
    %v265 = vtanh.pop %v264
    %267 = vrot.lane.b32.xlu0 %v265, 4
    %v268 = vpop.permute.xlu0 %267
    %v270 = vmul.f32 %v249, %v268
    %272 = vrot.lane.b32.xlu0 %v270, 120
    %v273 = vpop.permute.xlu0 %272
    %vm275 = vcmask 27650
    %276 = vst.msk [vmem:[#allocation2] sm:$0xc] %vm275, %v273
    %v277 = vrot.slane %v270, 2
    %278 = vrot.lane.b32.xlu0 %v277, 120
    %v279 = vpop.permute.xlu0 %278
    %v280 = vsel %vm133, %v279, 0
    %282 = vmatpush.msra.mxu0 0.0
    %283 = vmatpush.msra.mxu0 0.0
    %284 = vmatpush.msra.mxu0 0.0
    %285 = vmatpush.msra.mxu0 0.0
    %286 = vmatpush.msra.mxu0 0.0
    %287 = vmatpush.msra.mxu0 0.0
    %288 = vmatpush.msra.mxu0 0.0
    %289 = vmatpush.msra.mxu0 0.0
    %290 = vmatpush.msra.mxu0 0.0
    %291 = vmatpush.msra.mxu0 0.0
    %292 = vmatpush.msra.mxu0 0.0
    %293 = vmatpush.msra.mxu0 0.0
    %294 = vmatpush.msra.mxu0 0.0
    %295 = vmatpush.msra.mxu0 0.0
    %296 = vmatpush.msra.mxu0 0.0
    %297 = vmatpush.msra.mxu0 %v139
    %298 = vmatmul.f32.gmra.mxu0 %v280
    %v299 = vpop.f32.mrf.mxu0
    %v300 = vadd.f32 0.0, %v299
    %301 = vdwg.mxu0
    %v303 = vrot.slane %v300, 4
    %v305 = vadd.f32 %v128, %v303
    %v306 = vxor.u32 %v305, 2147483648
    %v307 = vmul.f32 %v306, 1.442695
    %v308 = vpow.pop %v307
    %v309 = vadd.f32 %v308, 1.0
    %v310 = vrcp.pop %v309
    %v311 = vmul.f32 %v309, %v310
    %v312 = vsub.f32 1.0, %v311
    %v313 = vmul.f32 %v310, %v312
    %v314 = vadd.f32 %v310, %v313
    %vm315 = vweird.f32 %v309
    %vm316 = vweird.f32 %v310
    %vm317 = vmor %vm315, %vm316
    %v318 = vsel %vm317, %v310, %v314
    %v319 = vand.u32 2147483647, %v309
    %vm320 = vcmp.eq.f32.partialorder %v319, 8.507059e+37
    %v321 = vand.u32 %v309, 2147483648
    %v322 = vor.u32 1.1754944e-38, %v321
    %v323 = vsel %vm320, %v322, %v318
    %v324 = vmul.f32 1.0, %v323
    %v325 = vtanh.pop %v305
    %v327 = vrot.slane %v264, 6
    %v329 = vmul.f32 %v324, %v327
    %331 = vrot.lane.b32.xlu0 %v325, 116
    %v332 = vpop.permute.xlu0 %331
    %v334 = vmul.f32 %v324, %v332
    %336 = vrot.lane.b32.xlu0 %v334, 4
    %v337 = vpop.permute.xlu0 %336
    %v339 = vadd.f32 %v329, %v337
    %v340 = vtanh.pop %v339
    %342 = vrot.lane.b32.xlu0 %v340, 4
    %v343 = vpop.permute.xlu0 %342
    %v345 = vmul.f32 %v324, %v343
    %347 = vrot.lane.b32.xlu0 %v345, 120
    %v348 = vpop.permute.xlu0 %347
    %vm350 = vcmask 29700
    %351 = vst.msk [vmem:[#allocation2] sm:$0x30] %vm350, %v348
    %v352 = vrot.slane %v345, 4
    %353 = vrot.lane.b32.xlu0 %v352, 120
    %v354 = vpop.permute.xlu0 %353
    %v355 = vsel %vm133, %v354, 0
    %357 = vmatpush.msra.mxu0 0.0
    %358 = vmatpush.msra.mxu0 0.0
    %359 = vmatpush.msra.mxu0 0.0
    %360 = vmatpush.msra.mxu0 0.0
    %361 = vmatpush.msra.mxu0 0.0
    %362 = vmatpush.msra.mxu0 0.0
    %363 = vmatpush.msra.mxu0 0.0
    %364 = vmatpush.msra.mxu0 0.0
    %365 = vmatpush.msra.mxu0 0.0
    %366 = vmatpush.msra.mxu0 0.0
    %367 = vmatpush.msra.mxu0 0.0
    %368 = vmatpush.msra.mxu0 0.0
    %369 = vmatpush.msra.mxu0 0.0
    %370 = vmatpush.msra.mxu0 0.0
    %371 = vmatpush.msra.mxu0 0.0
    %372 = vmatpush.msra.mxu0 %v139
    %373 = vmatmul.f32.gmra.mxu0 %v355
    %v374 = vpop.f32.mrf.mxu0
    %v375 = vadd.f32 0.0, %v374
    %376 = vdwg.mxu0
    %v378 = vrot.slane %v375, 2
    %v380 = vadd.f32 %v128, %v378
    %v381 = vxor.u32 %v380, 2147483648
    %v382 = vmul.f32 %v381, 1.442695
    %v383 = vpow.pop %v382
    %v384 = vadd.f32 %v383, 1.0
    %v385 = vrcp.pop %v384
    %v386 = vmul.f32 %v384, %v385
    %v387 = vsub.f32 1.0, %v386
    %v388 = vmul.f32 %v385, %v387
    %v389 = vadd.f32 %v385, %v388
    %vm390 = vweird.f32 %v384
    %vm391 = vweird.f32 %v385
    %vm392 = vmor %vm390, %vm391
    %v393 = vsel %vm392, %v385, %v389
    %v394 = vand.u32 2147483647, %v384
    %vm395 = vcmp.eq.f32.partialorder %v394, 8.507059e+37
    %v396 = vand.u32 %v384, 2147483648
    %v397 = vor.u32 1.1754944e-38, %v396
    %v398 = vsel %vm395, %v397, %v393
    %v399 = vmul.f32 1.0, %v398
    %v400 = vtanh.pop %v380
    %v402 = vrot.slane %v339, 6
    %v404 = vmul.f32 %v399, %v402
    %406 = vrot.lane.b32.xlu0 %v400, 116
    %v407 = vpop.permute.xlu0 %406
    %v409 = vmul.f32 %v399, %v407
    %411 = vrot.lane.b32.xlu0 %v409, 4
    %v412 = vpop.permute.xlu0 %411
    %v414 = vadd.f32 %v404, %v412
    %v415 = vtanh.pop %v414
    %417 = vrot.lane.b32.xlu0 %v415, 4
    %v418 = vpop.permute.xlu0 %417
    %v420 = vmul.f32 %v399, %v418
    %422 = vrot.lane.b32.xlu0 %v420, 120
    %v423 = vpop.permute.xlu0 %422
    %vm425 = vcmask 31750
    %426 = vst.msk [vmem:[#allocation2] sm:$0xc0] %vm425, %v423
    %v427 = vrot.slane %v420, 6
    %428 = vrot.lane.b32.xlu0 %v427, 120
    %v429 = vpop.permute.xlu0 %428
    %v430 = vsel %vm133, %v429, 0
    %432 = vmatpush.msra.mxu0 0.0
    %433 = vmatpush.msra.mxu0 0.0
    %434 = vmatpush.msra.mxu0 0.0
    %435 = vmatpush.msra.mxu0 0.0
    %436 = vmatpush.msra.mxu0 0.0
    %437 = vmatpush.msra.mxu0 0.0
    %438 = vmatpush.msra.mxu0 0.0
    %439 = vmatpush.msra.mxu0 0.0
    %440 = vmatpush.msra.mxu0 0.0
    %441 = vmatpush.msra.mxu0 0.0
    %442 = vmatpush.msra.mxu0 0.0
    %443 = vmatpush.msra.mxu0 0.0
    %444 = vmatpush.msra.mxu0 0.0
    %445 = vmatpush.msra.mxu0 0.0
    %446 = vmatpush.msra.mxu0 0.0
    %447 = vmatpush.msra.mxu0 %v139
    %448 = vmatmul.f32.gmra.mxu0 %v430
    %v449 = vpop.f32.mrf.mxu0
    %v450 = vadd.f32 0.0, %v449
    %451 = vdwg.mxu0
    %v452 = vadd.f32 %v131, %v450
    %v453 = vxor.u32 %v452, 2147483648
    %v454 = vmul.f32 %v453, 1.442695
    %v455 = vpow.pop %v454
    %v456 = vadd.f32 %v455, 1.0
    %v457 = vrcp.pop %v456
    %v458 = vmul.f32 %v456, %v457
    %v459 = vsub.f32 1.0, %v458
    %v460 = vmul.f32 %v457, %v459
    %v461 = vadd.f32 %v457, %v460
    %vm462 = vweird.f32 %v456
    %vm463 = vweird.f32 %v457
    %vm464 = vmor %vm462, %vm463
    %v465 = vsel %vm464, %v457, %v461
    %v466 = vand.u32 2147483647, %v456
    %vm467 = vcmp.eq.f32.partialorder %v466, 8.507059e+37
    %v468 = vand.u32 %v456, 2147483648
    %v469 = vor.u32 1.1754944e-38, %v468
    %v470 = vsel %vm467, %v469, %v465
    %v471 = vmul.f32 1.0, %v470
    %v472 = vtanh.pop %v452
    %v474 = vrot.slane %v414, 6
    %v476 = vmul.f32 %v471, %v474
    %478 = vrot.lane.b32.xlu0 %v472, 116
    %v479 = vpop.permute.xlu0 %478
    %v481 = vmul.f32 %v471, %v479
    %483 = vrot.lane.b32.xlu0 %v481, 4
    %v484 = vpop.permute.xlu0 %483
    %v486 = vadd.f32 %v476, %v484
    %v487 = vtanh.pop %v486
    %489 = vrot.lane.b32.xlu0 %v487, 4
    %v490 = vpop.permute.xlu0 %489
    %v492 = vmul.f32 %v471, %v490
    %494 = vrot.lane.b32.xlu0 %v492, 120
    %v495 = vpop.permute.xlu0 %494
    %497 = vst.msk [vmem:[#allocation2 + $0x8] sm:$0x3] %vm203, %v495
    %v498 = vsel %vm133, %v495, 0
    %500 = vmatpush.msra.mxu0 0.0
    %501 = vmatpush.msra.mxu0 0.0
    %502 = vmatpush.msra.mxu0 0.0
    %503 = vmatpush.msra.mxu0 0.0
    %504 = vmatpush.msra.mxu0 0.0
    %505 = vmatpush.msra.mxu0 0.0
    %506 = vmatpush.msra.mxu0 0.0
    %507 = vmatpush.msra.mxu0 0.0
    %508 = vmatpush.msra.mxu0 0.0
    %509 = vmatpush.msra.mxu0 0.0
    %510 = vmatpush.msra.mxu0 0.0
    %511 = vmatpush.msra.mxu0 0.0
    %512 = vmatpush.msra.mxu0 0.0
    %513 = vmatpush.msra.mxu0 0.0
    %514 = vmatpush.msra.mxu0 0.0
    %515 = vmatpush.msra.mxu0 %v139
    %516 = vmatmul.f32.gmra.mxu0 %v498
    %v517 = vpop.f32.mrf.mxu0
    %v518 = vadd.f32 0.0, %v517
    %519 = vdwg.mxu0
    %v521 = vrot.slane %v518, 6
    %v523 = vadd.f32 %v131, %v521
    %v524 = vxor.u32 %v523, 2147483648
    %v525 = vmul.f32 %v524, 1.442695
    %v526 = vpow.pop %v525
    %v527 = vadd.f32 %v526, 1.0
    %v528 = vrcp.pop %v527
    %v529 = vmul.f32 %v527, %v528
    %v530 = vsub.f32 1.0, %v529
    %v531 = vmul.f32 %v528, %v530
    %v532 = vadd.f32 %v528, %v531
    %vm533 = vweird.f32 %v527
    %vm534 = vweird.f32 %v528
    %vm535 = vmor %vm533, %vm534
    %v536 = vsel %vm535, %v528, %v532
    %v537 = vand.u32 2147483647, %v527
    %vm538 = vcmp.eq.f32.partialorder %v537, 8.507059e+37
    %v539 = vand.u32 %v527, 2147483648
    %v540 = vor.u32 1.1754944e-38, %v539
    %v541 = vsel %vm538, %v540, %v536
    %v542 = vmul.f32 1.0, %v541
    %v543 = vtanh.pop %v523
    %v545 = vrot.slane %v486, 6
    %v547 = vmul.f32 %v542, %v545
    %549 = vrot.lane.b32.xlu0 %v543, 116
    %v550 = vpop.permute.xlu0 %549
    %v552 = vmul.f32 %v542, %v550
    %554 = vrot.lane.b32.xlu0 %v552, 4
    %v555 = vpop.permute.xlu0 %554
    %v557 = vadd.f32 %v547, %v555
    %v558 = vtanh.pop %v557
    %560 = vrot.lane.b32.xlu0 %v558, 4
    %v561 = vpop.permute.xlu0 %560
    %v563 = vmul.f32 %v542, %v561
    %565 = vrot.lane.b32.xlu0 %v563, 120
    %v566 = vpop.permute.xlu0 %565
    %568 = vst.msk [vmem:[#allocation2 + $0x8] sm:$0xc] %vm275, %v566
    %v569 = vrot.slane %v563, 2
    %570 = vrot.lane.b32.xlu0 %v569, 120
    %v571 = vpop.permute.xlu0 %570
    %v572 = vsel %vm133, %v571, 0
    %574 = vmatpush.msra.mxu0 0.0
    %575 = vmatpush.msra.mxu0 0.0
    %576 = vmatpush.msra.mxu0 0.0
    %577 = vmatpush.msra.mxu0 0.0
    %578 = vmatpush.msra.mxu0 0.0
    %579 = vmatpush.msra.mxu0 0.0
    %580 = vmatpush.msra.mxu0 0.0
    %581 = vmatpush.msra.mxu0 0.0
    %582 = vmatpush.msra.mxu0 0.0
    %583 = vmatpush.msra.mxu0 0.0
    %584 = vmatpush.msra.mxu0 0.0
    %585 = vmatpush.msra.mxu0 0.0
    %586 = vmatpush.msra.mxu0 0.0
    %587 = vmatpush.msra.mxu0 0.0
    %588 = vmatpush.msra.mxu0 0.0
    %589 = vmatpush.msra.mxu0 %v139
    %590 = vmatmul.f32.gmra.mxu0 %v572
    %v591 = vpop.f32.mrf.mxu0
    %v592 = vadd.f32 0.0, %v591
    %593 = vdwg.mxu0
    %v595 = vrot.slane %v592, 4
    %v597 = vadd.f32 %v131, %v595
    %v598 = vxor.u32 %v597, 2147483648
    %v599 = vmul.f32 %v598, 1.442695
    %v600 = vpow.pop %v599
    %v601 = vadd.f32 %v600, 1.0
    %v602 = vrcp.pop %v601
    %v603 = vmul.f32 %v601, %v602
    %v604 = vsub.f32 1.0, %v603
    %v605 = vmul.f32 %v602, %v604
    %v606 = vadd.f32 %v602, %v605
    %vm607 = vweird.f32 %v601
    %vm608 = vweird.f32 %v602
    %vm609 = vmor %vm607, %vm608
    %v610 = vsel %vm609, %v602, %v606
    %v611 = vand.u32 2147483647, %v601
    %vm612 = vcmp.eq.f32.partialorder %v611, 8.507059e+37
    %v613 = vand.u32 %v601, 2147483648
    %v614 = vor.u32 1.1754944e-38, %v613
    %v615 = vsel %vm612, %v614, %v610
    %v616 = vmul.f32 1.0, %v615
    %v617 = vtanh.pop %v597
    %v619 = vrot.slane %v557, 6
    %v621 = vmul.f32 %v616, %v619
    %623 = vrot.lane.b32.xlu0 %v617, 116
    %v624 = vpop.permute.xlu0 %623
    %v626 = vmul.f32 %v616, %v624
    %628 = vrot.lane.b32.xlu0 %v626, 4
    %v629 = vpop.permute.xlu0 %628
    %v631 = vadd.f32 %v621, %v629
    %v632 = vtanh.pop %v631
    %634 = vrot.lane.b32.xlu0 %v632, 4
    %v635 = vpop.permute.xlu0 %634
    %v637 = vmul.f32 %v616, %v635
    %639 = vrot.lane.b32.xlu0 %v637, 120
    %v640 = vpop.permute.xlu0 %639
    %642 = vst.msk [vmem:[#allocation2 + $0x8] sm:$0x30] %vm350, %v640
    %v643 = vrot.slane %v637, 4
    %644 = vrot.lane.b32.xlu0 %v643, 120
    %v645 = vpop.permute.xlu0 %644
    %v646 = vsel %vm133, %v645, 0
    %648 = vmatpush.msra.mxu0 0.0
    %649 = vmatpush.msra.mxu0 0.0
    %650 = vmatpush.msra.mxu0 0.0
    %651 = vmatpush.msra.mxu0 0.0
    %652 = vmatpush.msra.mxu0 0.0
    %653 = vmatpush.msra.mxu0 0.0
    %654 = vmatpush.msra.mxu0 0.0
    %655 = vmatpush.msra.mxu0 0.0
    %656 = vmatpush.msra.mxu0 0.0
    %657 = vmatpush.msra.mxu0 0.0
    %658 = vmatpush.msra.mxu0 0.0
    %659 = vmatpush.msra.mxu0 0.0
    %660 = vmatpush.msra.mxu0 0.0
    %661 = vmatpush.msra.mxu0 0.0
    %662 = vmatpush.msra.mxu0 0.0
    %663 = vmatpush.msra.mxu0 %v139
    %664 = vmatmul.f32.gmra.mxu0 %v646
    %v665 = vpop.f32.mrf.mxu0
    %v666 = vadd.f32 0.0, %v665
    %667 = vdwg.mxu0
    %v669 = vrot.slane %v666, 2
    %v671 = vadd.f32 %v131, %v669
    %v672 = vxor.u32 %v671, 2147483648
    %v673 = vmul.f32 %v672, 1.442695
    %v674 = vpow.pop %v673
    %v675 = vadd.f32 %v674, 1.0
    %v676 = vrcp.pop %v675
    %v677 = vmul.f32 %v675, %v676
    %v678 = vsub.f32 1.0, %v677
    %v679 = vmul.f32 %v676, %v678
    %v680 = vadd.f32 %v676, %v679
    %vm681 = vweird.f32 %v675
    %vm682 = vweird.f32 %v676
    %vm683 = vmor %vm681, %vm682
    %v684 = vsel %vm683, %v676, %v680
    %v685 = vand.u32 2147483647, %v675
    %vm686 = vcmp.eq.f32.partialorder %v685, 8.507059e+37
    %v687 = vand.u32 %v675, 2147483648
    %v688 = vor.u32 1.1754944e-38, %v687
    %v689 = vsel %vm686, %v688, %v684
    %v690 = vmul.f32 1.0, %v689
    %v691 = vtanh.pop %v671
    %v693 = vrot.slane %v631, 6
    %v695 = vmul.f32 %v690, %v693
    %697 = vrot.lane.b32.xlu0 %v691, 116
    %v698 = vpop.permute.xlu0 %697
    %v700 = vmul.f32 %v690, %v698
    %702 = vrot.lane.b32.xlu0 %v700, 4
    %v703 = vpop.permute.xlu0 %702
    %v705 = vadd.f32 %v695, %v703
    %v706 = vtanh.pop %v705
    %708 = vrot.lane.b32.xlu0 %v706, 4
    %v709 = vpop.permute.xlu0 %708
    %v711 = vmul.f32 %v690, %v709
    %713 = vrot.lane.b32.xlu0 %v711, 120
    %v714 = vpop.permute.xlu0 %713
    %716 = vst.msk [vmem:[#allocation2 + $0x8] sm:$0xc0] %vm425, %v714
    %v717 = vld [vmem:[#allocation2] sm:$0xff]
    %v718 = vld [vmem:[#allocation2 + $0x8] sm:$0xff]
    %v720 = vperm.slane %v97, 0
    %v723 = vsel %vm133, %v717, 0
    %v726 = vsel %vm133, %v718, 0
    %v729 = vsel %vm137, %v95, 0
    %731 = vmatpush.msra.mxu0 0.0
    %732 = vmatpush.msra.mxu0 0.0
    %733 = vmatpush.msra.mxu0 0.0
    %734 = vmatpush.msra.mxu0 0.0
    %735 = vmatpush.msra.mxu0 0.0
    %736 = vmatpush.msra.mxu0 0.0
    %737 = vmatpush.msra.mxu0 0.0
    %738 = vmatpush.msra.mxu0 0.0
    %739 = vmatpush.msra.mxu0 0.0
    %740 = vmatpush.msra.mxu0 0.0
    %741 = vmatpush.msra.mxu0 0.0
    %742 = vmatpush.msra.mxu0 0.0
    %743 = vmatpush.msra.mxu0 0.0
    %744 = vmatpush.msra.mxu0 0.0
    %745 = vmatpush.msra.mxu0 0.0
    %746 = vmatpush.msra.mxu0 %v729
    %747 = vmatmul.f32.gmra.mxu0 %v723
    %v748 = vpop.f32.mrf.mxu0
    %v749 = vadd.f32 %v720, %v748
    %750 = vmatmul.f32.gmra.mxu0 %v726
    %v751 = vpop.f32.mrf.mxu0
    %v752 = vadd.f32 %v720, %v751
    %753 = vdwg.mxu0
    %v755 = vsel %vm137, %v96, 0
    %757 = vmatpush.msra.mxu0 0.0
    %758 = vmatpush.msra.mxu0 0.0
    %759 = vmatpush.msra.mxu0 0.0
    %760 = vmatpush.msra.mxu0 0.0
    %761 = vmatpush.msra.mxu0 0.0
    %762 = vmatpush.msra.mxu0 0.0
    %763 = vmatpush.msra.mxu0 0.0
    %764 = vmatpush.msra.mxu0 0.0
    %765 = vmatpush.msra.mxu0 0.0
    %766 = vmatpush.msra.mxu0 0.0
    %767 = vmatpush.msra.mxu0 0.0
    %768 = vmatpush.msra.mxu0 0.0
    %769 = vmatpush.msra.mxu0 0.0
    %770 = vmatpush.msra.mxu0 0.0
    %771 = vmatpush.msra.mxu0 0.0
    %772 = vmatpush.msra.mxu0 %v755
    %773 = vmatmul.f32.gmra.mxu0 %v135
    %v774 = vpop.f32.mrf.mxu0
    %v775 = vadd.f32 0.0, %v774
    %776 = vdwg.mxu0
    %v777 = vadd.f32 %v749, %v775
    %v778 = vxor.u32 %v777, 2147483648
    %v779 = vmul.f32 %v778, 1.442695
    %v780 = vpow.pop %v779
    %v781 = vadd.f32 %v780, 1.0
    %v782 = vrcp.pop %v781
    %v783 = vmul.f32 %v781, %v782
    %v784 = vsub.f32 1.0, %v783
    %v785 = vmul.f32 %v782, %v784
    %v786 = vadd.f32 %v782, %v785
    %vm787 = vweird.f32 %v781
    %vm788 = vweird.f32 %v782
    %vm789 = vmor %vm787, %vm788
    %v790 = vsel %vm789, %v782, %v786
    %v791 = vand.u32 2147483647, %v781
    %vm792 = vcmp.eq.f32.partialorder %v791, 8.507059e+37
    %v793 = vand.u32 %v781, 2147483648
    %v794 = vor.u32 1.1754944e-38, %v793
    %v795 = vsel %vm792, %v794, %v790
    %v796 = vmul.f32 1.0, %v795
    %v797 = vtanh.pop %v777
    %v798 = vmul.f32 %v796, 0.0
    %800 = vrot.lane.b32.xlu0 %v797, 116
    %v801 = vpop.permute.xlu0 %800
    %v803 = vmul.f32 %v796, %v801
    %805 = vrot.lane.b32.xlu0 %v803, 4
    %v806 = vpop.permute.xlu0 %805
    %v808 = vadd.f32 %v798, %v806
    %v809 = vtanh.pop %v808
    %811 = vrot.lane.b32.xlu0 %v809, 4
    %v812 = vpop.permute.xlu0 %811
    %v814 = vmul.f32 %v796, %v812
    %816 = vrot.lane.b32.xlu0 %v814, 120
    %v817 = vpop.permute.xlu0 %816
    %vm819 = vcmask 25601
    %820 = vst.msk [vmem:[#allocation3 - $0x1] sm:$0x2] %vm819, %v817
    %v821 = vsel %vm133, %v817, 0
    %823 = vmatpush.msra.mxu0 0.0
    %824 = vmatpush.msra.mxu0 0.0
    %825 = vmatpush.msra.mxu0 0.0
    %826 = vmatpush.msra.mxu0 0.0
    %827 = vmatpush.msra.mxu0 0.0
    %828 = vmatpush.msra.mxu0 0.0
    %829 = vmatpush.msra.mxu0 0.0
    %830 = vmatpush.msra.mxu0 0.0
    %831 = vmatpush.msra.mxu0 0.0
    %832 = vmatpush.msra.mxu0 0.0
    %833 = vmatpush.msra.mxu0 0.0
    %834 = vmatpush.msra.mxu0 0.0
    %835 = vmatpush.msra.mxu0 0.0
    %836 = vmatpush.msra.mxu0 0.0
    %837 = vmatpush.msra.mxu0 0.0
    %838 = vmatpush.msra.mxu0 %v755
    %839 = vmatmul.f32.gmra.mxu0 %v821
    %v840 = vpop.f32.mrf.mxu0
    %v841 = vadd.f32 0.0, %v840
    %842 = vdwg.mxu0
    %v844 = vrot.slane %v841, 6
    %v846 = vadd.f32 %v749, %v844
    %v847 = vxor.u32 %v846, 2147483648
    %v848 = vmul.f32 %v847, 1.442695
    %v849 = vpow.pop %v848
    %v850 = vadd.f32 %v849, 1.0
    %v851 = vrcp.pop %v850
    %v852 = vmul.f32 %v850, %v851
    %v853 = vsub.f32 1.0, %v852
    %v854 = vmul.f32 %v851, %v853
    %v855 = vadd.f32 %v851, %v854
    %vm856 = vweird.f32 %v850
    %vm857 = vweird.f32 %v851
    %vm858 = vmor %vm856, %vm857
    %v859 = vsel %vm858, %v851, %v855
    %v860 = vand.u32 2147483647, %v850
    %vm861 = vcmp.eq.f32.partialorder %v860, 8.507059e+37
    %v862 = vand.u32 %v850, 2147483648
    %v863 = vor.u32 1.1754944e-38, %v862
    %v864 = vsel %vm861, %v863, %v859
    %v865 = vmul.f32 1.0, %v864
    %v866 = vtanh.pop %v846
    %v868 = vrot.slane %v808, 6
    %v870 = vmul.f32 %v865, %v868
    %872 = vrot.lane.b32.xlu0 %v866, 116
    %v873 = vpop.permute.xlu0 %872
    %v875 = vmul.f32 %v865, %v873
    %877 = vrot.lane.b32.xlu0 %v875, 4
    %v878 = vpop.permute.xlu0 %877
    %v880 = vadd.f32 %v870, %v878
    %v881 = vtanh.pop %v880
    %883 = vrot.lane.b32.xlu0 %v881, 4
    %v884 = vpop.permute.xlu0 %883
    %v886 = vmul.f32 %v865, %v884
    %888 = vrot.lane.b32.xlu0 %v886, 120
    %v889 = vpop.permute.xlu0 %888
    %vm891 = vcmask 27651
    %892 = vst.msk [vmem:[#allocation3 - $0x2] sm:$0x8] %vm891, %v889
    %v893 = vrot.slane %v886, 2
    %894 = vrot.lane.b32.xlu0 %v893, 120
    %v895 = vpop.permute.xlu0 %894
    %v896 = vsel %vm133, %v895, 0
    %898 = vmatpush.msra.mxu0 0.0
    %899 = vmatpush.msra.mxu0 0.0
    %900 = vmatpush.msra.mxu0 0.0
    %901 = vmatpush.msra.mxu0 0.0
    %902 = vmatpush.msra.mxu0 0.0
    %903 = vmatpush.msra.mxu0 0.0
    %904 = vmatpush.msra.mxu0 0.0
    %905 = vmatpush.msra.mxu0 0.0
    %906 = vmatpush.msra.mxu0 0.0
    %907 = vmatpush.msra.mxu0 0.0
    %908 = vmatpush.msra.mxu0 0.0
    %909 = vmatpush.msra.mxu0 0.0
    %910 = vmatpush.msra.mxu0 0.0
    %911 = vmatpush.msra.mxu0 0.0
    %912 = vmatpush.msra.mxu0 0.0
    %913 = vmatpush.msra.mxu0 %v755
    %914 = vmatmul.f32.gmra.mxu0 %v896
    %v915 = vpop.f32.mrf.mxu0
    %v916 = vadd.f32 0.0, %v915
    %917 = vdwg.mxu0
    %v919 = vrot.slane %v916, 4
    %v921 = vadd.f32 %v749, %v919
    %v922 = vxor.u32 %v921, 2147483648
    %v923 = vmul.f32 %v922, 1.442695
    %v924 = vpow.pop %v923
    %v925 = vadd.f32 %v924, 1.0
    %v926 = vrcp.pop %v925
    %v927 = vmul.f32 %v925, %v926
    %v928 = vsub.f32 1.0, %v927
    %v929 = vmul.f32 %v926, %v928
    %v930 = vadd.f32 %v926, %v929
    %vm931 = vweird.f32 %v925
    %vm932 = vweird.f32 %v926
    %vm933 = vmor %vm931, %vm932
    %v934 = vsel %vm933, %v926, %v930
    %v935 = vand.u32 2147483647, %v925
    %vm936 = vcmp.eq.f32.partialorder %v935, 8.507059e+37
    %v937 = vand.u32 %v925, 2147483648
    %v938 = vor.u32 1.1754944e-38, %v937
    %v939 = vsel %vm936, %v938, %v934
    %v940 = vmul.f32 1.0, %v939
    %v941 = vtanh.pop %v921
    %v943 = vrot.slane %v880, 6
    %v945 = vmul.f32 %v940, %v943
    %947 = vrot.lane.b32.xlu0 %v941, 116
    %v948 = vpop.permute.xlu0 %947
    %v950 = vmul.f32 %v940, %v948
    %952 = vrot.lane.b32.xlu0 %v950, 4
    %v953 = vpop.permute.xlu0 %952
    %v955 = vadd.f32 %v945, %v953
    %v956 = vtanh.pop %v955
    %958 = vrot.lane.b32.xlu0 %v956, 4
    %v959 = vpop.permute.xlu0 %958
    %v961 = vmul.f32 %v940, %v959
    %963 = vrot.lane.b32.xlu0 %v961, 120
    %v964 = vpop.permute.xlu0 %963
    %vm966 = vcmask 29701
    %967 = vst.msk [vmem:[#allocation3 - $0x3] sm:$0x20] %vm966, %v964
    %v968 = vrot.slane %v961, 4
    %969 = vrot.lane.b32.xlu0 %v968, 120
    %v970 = vpop.permute.xlu0 %969
    %v971 = vsel %vm133, %v970, 0
    %973 = vmatpush.msra.mxu0 0.0
    %974 = vmatpush.msra.mxu0 0.0
    %975 = vmatpush.msra.mxu0 0.0
    %976 = vmatpush.msra.mxu0 0.0
    %977 = vmatpush.msra.mxu0 0.0
    %978 = vmatpush.msra.mxu0 0.0
    %979 = vmatpush.msra.mxu0 0.0
    %980 = vmatpush.msra.mxu0 0.0
    %981 = vmatpush.msra.mxu0 0.0
    %982 = vmatpush.msra.mxu0 0.0
    %983 = vmatpush.msra.mxu0 0.0
    %984 = vmatpush.msra.mxu0 0.0
    %985 = vmatpush.msra.mxu0 0.0
    %986 = vmatpush.msra.mxu0 0.0
    %987 = vmatpush.msra.mxu0 0.0
    %988 = vmatpush.msra.mxu0 %v755
    %989 = vmatmul.f32.gmra.mxu0 %v971
    %v990 = vpop.f32.mrf.mxu0
    %v991 = vadd.f32 0.0, %v990
    %992 = vdwg.mxu0
    %v994 = vrot.slane %v991, 2
    %v996 = vadd.f32 %v749, %v994
    %v997 = vxor.u32 %v996, 2147483648
    %v998 = vmul.f32 %v997, 1.442695
    %v999 = vpow.pop %v998
    %v1000 = vadd.f32 %v999, 1.0
    %v1001 = vrcp.pop %v1000
    %v1002 = vmul.f32 %v1000, %v1001
    %v1003 = vsub.f32 1.0, %v1002
    %v1004 = vmul.f32 %v1001, %v1003
    %v1005 = vadd.f32 %v1001, %v1004
    %vm1006 = vweird.f32 %v1000
    %vm1007 = vweird.f32 %v1001
    %vm1008 = vmor %vm1006, %vm1007
    %v1009 = vsel %vm1008, %v1001, %v1005
    %v1010 = vand.u32 2147483647, %v1000
    %vm1011 = vcmp.eq.f32.partialorder %v1010, 8.507059e+37
    %v1012 = vand.u32 %v1000, 2147483648
    %v1013 = vor.u32 1.1754944e-38, %v1012
    %v1014 = vsel %vm1011, %v1013, %v1009
    %v1015 = vmul.f32 1.0, %v1014
    %v1016 = vtanh.pop %v996
    %v1018 = vrot.slane %v955, 6
    %v1020 = vmul.f32 %v1015, %v1018
    %1022 = vrot.lane.b32.xlu0 %v1016, 116
    %v1023 = vpop.permute.xlu0 %1022
    %v1025 = vmul.f32 %v1015, %v1023
    %1027 = vrot.lane.b32.xlu0 %v1025, 4
    %v1028 = vpop.permute.xlu0 %1027
    %v1030 = vadd.f32 %v1020, %v1028
    %v1031 = vtanh.pop %v1030
    %1033 = vrot.lane.b32.xlu0 %v1031, 4
    %v1034 = vpop.permute.xlu0 %1033
    %v1036 = vmul.f32 %v1015, %v1034
    %1038 = vrot.lane.b32.xlu0 %v1036, 120
    %v1039 = vpop.permute.xlu0 %1038
    %vm1041 = vcmask 31751
    %1042 = vst.msk [vmem:[#allocation3 - $0x4] sm:$0x80] %vm1041, %v1039
    %v1043 = vrot.slane %v1036, 6
    %1044 = vrot.lane.b32.xlu0 %v1043, 120
    %v1045 = vpop.permute.xlu0 %1044
    %v1046 = vsel %vm133, %v1045, 0
    %1048 = vmatpush.msra.mxu0 0.0
    %1049 = vmatpush.msra.mxu0 0.0
    %1050 = vmatpush.msra.mxu0 0.0
    %1051 = vmatpush.msra.mxu0 0.0
    %1052 = vmatpush.msra.mxu0 0.0
    %1053 = vmatpush.msra.mxu0 0.0
    %1054 = vmatpush.msra.mxu0 0.0
    %1055 = vmatpush.msra.mxu0 0.0
    %1056 = vmatpush.msra.mxu0 0.0
    %1057 = vmatpush.msra.mxu0 0.0
    %1058 = vmatpush.msra.mxu0 0.0
    %1059 = vmatpush.msra.mxu0 0.0
    %1060 = vmatpush.msra.mxu0 0.0
    %1061 = vmatpush.msra.mxu0 0.0
    %1062 = vmatpush.msra.mxu0 0.0
    %1063 = vmatpush.msra.mxu0 %v755
    %1064 = vmatmul.f32.gmra.mxu0 %v1046
    %v1065 = vpop.f32.mrf.mxu0
    %v1066 = vadd.f32 0.0, %v1065
    %1067 = vdwg.mxu0
    %v1068 = vadd.f32 %v752, %v1066
    %v1069 = vxor.u32 %v1068, 2147483648
    %v1070 = vmul.f32 %v1069, 1.442695
    %v1071 = vpow.pop %v1070
    %v1072 = vadd.f32 %v1071, 1.0
    %v1073 = vrcp.pop %v1072
    %v1074 = vmul.f32 %v1072, %v1073
    %v1075 = vsub.f32 1.0, %v1074
    %v1076 = vmul.f32 %v1073, %v1075
    %v1077 = vadd.f32 %v1073, %v1076
    %vm1078 = vweird.f32 %v1072
    %vm1079 = vweird.f32 %v1073
    %vm1080 = vmor %vm1078, %vm1079
    %v1081 = vsel %vm1080, %v1073, %v1077
    %v1082 = vand.u32 2147483647, %v1072
    %vm1083 = vcmp.eq.f32.partialorder %v1082, 8.507059e+37
    %v1084 = vand.u32 %v1072, 2147483648
    %v1085 = vor.u32 1.1754944e-38, %v1084
    %v1086 = vsel %vm1083, %v1085, %v1081
    %v1087 = vmul.f32 1.0, %v1086
    %v1088 = vtanh.pop %v1068
    %v1090 = vrot.slane %v1030, 6
    %v1092 = vmul.f32 %v1087, %v1090
    %1094 = vrot.lane.b32.xlu0 %v1088, 116
    %v1095 = vpop.permute.xlu0 %1094
    %v1097 = vmul.f32 %v1087, %v1095
    %1099 = vrot.lane.b32.xlu0 %v1097, 4
    %v1100 = vpop.permute.xlu0 %1099
    %v1102 = vadd.f32 %v1092, %v1100
    %v1103 = vtanh.pop %v1102
    %1105 = vrot.lane.b32.xlu0 %v1103, 4
    %v1106 = vpop.permute.xlu0 %1105
    %v1108 = vmul.f32 %v1087, %v1106
    %1110 = vrot.lane.b32.xlu0 %v1108, 120
    %v1111 = vpop.permute.xlu0 %1110
    %1113 = vst.msk [vmem:[#allocation3 + $0x3] sm:$0x2] %vm819, %v1111
    %v1114 = vsel %vm133, %v1111, 0
    %1116 = vmatpush.msra.mxu0 0.0
    %1117 = vmatpush.msra.mxu0 0.0
    %1118 = vmatpush.msra.mxu0 0.0
    %1119 = vmatpush.msra.mxu0 0.0
    %1120 = vmatpush.msra.mxu0 0.0
    %1121 = vmatpush.msra.mxu0 0.0
    %1122 = vmatpush.msra.mxu0 0.0
    %1123 = vmatpush.msra.mxu0 0.0
    %1124 = vmatpush.msra.mxu0 0.0
    %1125 = vmatpush.msra.mxu0 0.0
    %1126 = vmatpush.msra.mxu0 0.0
    %1127 = vmatpush.msra.mxu0 0.0
    %1128 = vmatpush.msra.mxu0 0.0
    %1129 = vmatpush.msra.mxu0 0.0
    %1130 = vmatpush.msra.mxu0 0.0
    %1131 = vmatpush.msra.mxu0 %v755
    %1132 = vmatmul.f32.gmra.mxu0 %v1114
    %v1133 = vpop.f32.mrf.mxu0
    %v1134 = vadd.f32 0.0, %v1133
    %1135 = vdwg.mxu0
    %v1137 = vrot.slane %v1134, 6
    %v1139 = vadd.f32 %v752, %v1137
    %v1140 = vxor.u32 %v1139, 2147483648
    %v1141 = vmul.f32 %v1140, 1.442695
    %v1142 = vpow.pop %v1141
    %v1143 = vadd.f32 %v1142, 1.0
    %v1144 = vrcp.pop %v1143
    %v1145 = vmul.f32 %v1143, %v1144
    %v1146 = vsub.f32 1.0, %v1145
    %v1147 = vmul.f32 %v1144, %v1146
    %v1148 = vadd.f32 %v1144, %v1147
    %vm1149 = vweird.f32 %v1143
    %vm1150 = vweird.f32 %v1144
    %vm1151 = vmor %vm1149, %vm1150
    %v1152 = vsel %vm1151, %v1144, %v1148
    %v1153 = vand.u32 2147483647, %v1143
    %vm1154 = vcmp.eq.f32.partialorder %v1153, 8.507059e+37
    %v1155 = vand.u32 %v1143, 2147483648
    %v1156 = vor.u32 1.1754944e-38, %v1155
    %v1157 = vsel %vm1154, %v1156, %v1152
    %v1158 = vmul.f32 1.0, %v1157
    %v1159 = vtanh.pop %v1139
    %v1161 = vrot.slane %v1102, 6
    %v1163 = vmul.f32 %v1158, %v1161
    %1165 = vrot.lane.b32.xlu0 %v1159, 116
    %v1166 = vpop.permute.xlu0 %1165
    %v1168 = vmul.f32 %v1158, %v1166
    %1170 = vrot.lane.b32.xlu0 %v1168, 4
    %v1171 = vpop.permute.xlu0 %1170
    %v1173 = vadd.f32 %v1163, %v1171
    %v1174 = vtanh.pop %v1173
    %1176 = vrot.lane.b32.xlu0 %v1174, 4
    %v1177 = vpop.permute.xlu0 %1176
    %v1179 = vmul.f32 %v1158, %v1177
    %1181 = vrot.lane.b32.xlu0 %v1179, 120
    %v1182 = vpop.permute.xlu0 %1181
    %1184 = vst.msk [vmem:[#allocation3 + $0x2] sm:$0x8] %vm891, %v1182
    %v1185 = vrot.slane %v1179, 2
    %1186 = vrot.lane.b32.xlu0 %v1185, 120
    %v1187 = vpop.permute.xlu0 %1186
    %v1188 = vsel %vm133, %v1187, 0
    %1190 = vmatpush.msra.mxu0 0.0
    %1191 = vmatpush.msra.mxu0 0.0
    %1192 = vmatpush.msra.mxu0 0.0
    %1193 = vmatpush.msra.mxu0 0.0
    %1194 = vmatpush.msra.mxu0 0.0
    %1195 = vmatpush.msra.mxu0 0.0
    %1196 = vmatpush.msra.mxu0 0.0
    %1197 = vmatpush.msra.mxu0 0.0
    %1198 = vmatpush.msra.mxu0 0.0
    %1199 = vmatpush.msra.mxu0 0.0
    %1200 = vmatpush.msra.mxu0 0.0
    %1201 = vmatpush.msra.mxu0 0.0
    %1202 = vmatpush.msra.mxu0 0.0
    %1203 = vmatpush.msra.mxu0 0.0
    %1204 = vmatpush.msra.mxu0 0.0
    %1205 = vmatpush.msra.mxu0 %v755
    %1206 = vmatmul.f32.gmra.mxu0 %v1188
    %v1207 = vpop.f32.mrf.mxu0
    %v1208 = vadd.f32 0.0, %v1207
    %1209 = vdwg.mxu0
    %v1211 = vrot.slane %v1208, 4
    %v1213 = vadd.f32 %v752, %v1211
    %v1214 = vxor.u32 %v1213, 2147483648
    %v1215 = vmul.f32 %v1214, 1.442695
    %v1216 = vpow.pop %v1215
    %v1217 = vadd.f32 %v1216, 1.0
    %v1218 = vrcp.pop %v1217
    %v1219 = vmul.f32 %v1217, %v1218
    %v1220 = vsub.f32 1.0, %v1219
    %v1221 = vmul.f32 %v1218, %v1220
    %v1222 = vadd.f32 %v1218, %v1221
    %vm1223 = vweird.f32 %v1217
    %vm1224 = vweird.f32 %v1218
    %vm1225 = vmor %vm1223, %vm1224
    %v1226 = vsel %vm1225, %v1218, %v1222
    %v1227 = vand.u32 2147483647, %v1217
    %vm1228 = vcmp.eq.f32.partialorder %v1227, 8.507059e+37
    %v1229 = vand.u32 %v1217, 2147483648
    %v1230 = vor.u32 1.1754944e-38, %v1229
    %v1231 = vsel %vm1228, %v1230, %v1226
    %v1232 = vmul.f32 1.0, %v1231
    %v1233 = vtanh.pop %v1213
    %v1235 = vrot.slane %v1173, 6
    %v1237 = vmul.f32 %v1232, %v1235
    %1239 = vrot.lane.b32.xlu0 %v1233, 116
    %v1240 = vpop.permute.xlu0 %1239
    %v1242 = vmul.f32 %v1232, %v1240
    %1244 = vrot.lane.b32.xlu0 %v1242, 4
    %v1245 = vpop.permute.xlu0 %1244
    %v1247 = vadd.f32 %v1237, %v1245
    %v1248 = vtanh.pop %v1247
    %1250 = vrot.lane.b32.xlu0 %v1248, 4
    %v1251 = vpop.permute.xlu0 %1250
    %v1253 = vmul.f32 %v1232, %v1251
    %1255 = vrot.lane.b32.xlu0 %v1253, 120
    %v1256 = vpop.permute.xlu0 %1255
    %1258 = vst.msk [vmem:[#allocation3 + $0x1] sm:$0x20] %vm966, %v1256
    %v1259 = vrot.slane %v1253, 4
    %1260 = vrot.lane.b32.xlu0 %v1259, 120
    %v1261 = vpop.permute.xlu0 %1260
    %v1262 = vsel %vm133, %v1261, 0
    %1264 = vmatpush.msra.mxu0 0.0
    %1265 = vmatpush.msra.mxu0 0.0
    %1266 = vmatpush.msra.mxu0 0.0
    %1267 = vmatpush.msra.mxu0 0.0
    %1268 = vmatpush.msra.mxu0 0.0
    %1269 = vmatpush.msra.mxu0 0.0
    %1270 = vmatpush.msra.mxu0 0.0
    %1271 = vmatpush.msra.mxu0 0.0
    %1272 = vmatpush.msra.mxu0 0.0
    %1273 = vmatpush.msra.mxu0 0.0
    %1274 = vmatpush.msra.mxu0 0.0
    %1275 = vmatpush.msra.mxu0 0.0
    %1276 = vmatpush.msra.mxu0 0.0
    %1277 = vmatpush.msra.mxu0 0.0
    %1278 = vmatpush.msra.mxu0 0.0
    %1279 = vmatpush.msra.mxu0 %v755
    %1280 = vmatmul.f32.gmra.mxu0 %v1262
    %v1281 = vpop.f32.mrf.mxu0
    %v1282 = vadd.f32 0.0, %v1281
    %1283 = vdwg.mxu0
    %v1285 = vrot.slane %v1282, 2
    %v1287 = vadd.f32 %v752, %v1285
    %v1288 = vxor.u32 %v1287, 2147483648
    %v1289 = vmul.f32 %v1288, 1.442695
    %v1290 = vpow.pop %v1289
    %v1291 = vadd.f32 %v1290, 1.0
    %v1292 = vrcp.pop %v1291
    %v1293 = vmul.f32 %v1291, %v1292
    %v1294 = vsub.f32 1.0, %v1293
    %v1295 = vmul.f32 %v1292, %v1294
    %v1296 = vadd.f32 %v1292, %v1295
    %vm1297 = vweird.f32 %v1291
    %vm1298 = vweird.f32 %v1292
    %vm1299 = vmor %vm1297, %vm1298
    %v1300 = vsel %vm1299, %v1292, %v1296
    %v1301 = vand.u32 2147483647, %v1291
    %vm1302 = vcmp.eq.f32.partialorder %v1301, 8.507059e+37
    %v1303 = vand.u32 %v1291, 2147483648
    %v1304 = vor.u32 1.1754944e-38, %v1303
    %v1305 = vsel %vm1302, %v1304, %v1300
    %v1306 = vmul.f32 1.0, %v1305
    %v1307 = vtanh.pop %v1287
    %v1309 = vrot.slane %v1247, 6
    %v1311 = vmul.f32 %v1306, %v1309
    %1313 = vrot.lane.b32.xlu0 %v1307, 116
    %v1314 = vpop.permute.xlu0 %1313
    %v1316 = vmul.f32 %v1306, %v1314
    %1318 = vrot.lane.b32.xlu0 %v1316, 4
    %v1319 = vpop.permute.xlu0 %1318
    %v1321 = vadd.f32 %v1311, %v1319
    %v1322 = vtanh.pop %v1321
    %1324 = vrot.lane.b32.xlu0 %v1322, 4
    %v1325 = vpop.permute.xlu0 %1324
    %v1327 = vmul.f32 %v1306, %v1325
    %1329 = vrot.lane.b32.xlu0 %v1327, 120
    %v1330 = vpop.permute.xlu0 %1329
    %1332 = vst.msk [vmem:[#allocation3] sm:$0x80] %vm1041, %v1330
    %v1333 = vld [vmem:[#allocation3] sm:$0xff]
    %v1334 = vld [vmem:[%s7] sm:$0xf]
    %v1335 = vld [vmem:[#allocation9] sm:$0x1]
    %v1337 = vperm.slane %v1335, 0
    %v1340 = vsel %vm133, %v1333, 0
    %v1343 = vsel %vm137, %v1334, 0
    %1345 = vmatpush.msra.mxu0 0.0
    %1346 = vmatpush.msra.mxu0 0.0
    %1347 = vmatpush.msra.mxu0 0.0
    %1348 = vmatpush.msra.mxu0 0.0
    %1349 = vmatpush.msra.mxu0 0.0
    %1350 = vmatpush.msra.mxu0 0.0
    %1351 = vmatpush.msra.mxu0 0.0
    %1352 = vmatpush.msra.mxu0 0.0
    %1353 = vmatpush.msra.mxu0 0.0
    %1354 = vmatpush.msra.mxu0 0.0
    %1355 = vmatpush.msra.mxu0 0.0
    %1356 = vmatpush.msra.mxu0 0.0
    %1357 = vmatpush.msra.mxu0 0.0
    %1358 = vmatpush.msra.mxu0 0.0
    %1359 = vmatpush.msra.mxu0 0.0
    %1360 = vmatpush.msra.mxu0 %v1343
    %1361 = vmatmul.f32.gmra.mxu0 %v1340
    %v1362 = vpop.f32.mrf.mxu0
    %v1363 = vadd.f32 %v1337, %v1362
    %1364 = vdwg.mxu0
    %vm1365 = vcmask 15360
    %1366 = vst.msk [vmem:[%s9] sm:$0xff] %vm1365, %v1363
    // Predicated region
    $region54: #{rnn_model_forward.1} parent=1 // pred_check
      _
    $region55: #{rnn_model_forward.1} parent=1 // pred_check_branch
      %1368 = sbr.rel (0) target = $region57
    $region56: #{rnn_model_forward.1} parent=1 // pred_region
      _
    $region57: #{rnn_model_forward.1} parent=1 // pred_fallthru
      _
    // Predicated region
    $region58: #{rnn_model_forward.1} parent=1 // pred_check
      _
    $region59: #{rnn_model_forward.1} parent=1 // pred_check_branch
      %1370 = sbr.rel (0) target = $region61
    $region60: #{rnn_model_forward.1} parent=1 // pred_region
      _
    $region61: #{rnn_model_forward.1} parent=1 // pred_fallthru
      _
    %1371 = vsyncpa [#allocation5], 1
    %1372 = vsyncpa [#allocation7], 1
    %1373 = vsyncpa [#allocation10], 1

</llo_original>
